<compile_context>
chip_gen: v7x
topology: tpu7x:2x2x1
jax: 0.10.0
libtpu: 0.0.40
codegen_flags: <defaults>
</compile_context>

<pallas_src>
import functools

import jax
import jax.numpy as jnp
import numpy as np
from jax.experimental import pallas as pl
from jax.experimental.pallas import tpu as pltpu

_C1, _C2, _C3 = 32, 64, 64
_K1P = 16                      # conv1 im2col K (9 taps zero-padded to 16)
_NSTR, _NFRET = 6, 22          # fc2 output viewed as (6 strings, 22 frets)


def _ceil8(v):
    return ((v + 7) // 8) * 8


def _pads(tb):
    """Zero rows appended per conv stage so every shifted slice stays in range
    (im2col shift offsets reach 2*TB*Ws + 2*TB; pool shift reaches TB)."""
    p3 = _ceil8(tb)
    p2 = _ceil8(p3 + 2 * tb)
    p1 = _ceil8(p2 + 2 * tb)
    return p1, p2, p3


def _pick_tb(n, ws):
    """Batch-block size: VMEM-budgeted (v7x-safe) and >=2 grid steps when possible."""
    per_sample = 4 * ws * (6 * _K1P + 6 * _C1 + 4 * 9 * _C1 + 4 * _C2
                           + 2 * 9 * _C2 + 2 * _C3)   # f32 activation bytes
    budget = 12 * 2 ** 20
    tb = max(1, min(32, budget // per_sample))
    if n >= 2:
        tb = min(tb, (n + 1) // 2)      # keep >=2 grid steps for v7x's 2 TCs
    if tb >= 8:
        tb = (tb // 8) * 8              # 8-aligned slices when possible
    return int(tb)


# ----------------------------------------------------------------------------
# Fused kernel: one grid step processes TB samples
# ----------------------------------------------------------------------------
def _tabcnn_kernel(xcol_ref, w1_ref, b1_ref, w2_ref, b2_ref, w3_ref, b3_ref,
                   fc1w_ref, fc1b_ref, fc2w_ref, fc2b_ref, o_ref,
                   *, tb, ws, wp, use_final_layer):
    f32 = jnp.float32
    tbw = tb * ws
    _, p2, p3 = _pads(tb)
    m2 = 4 * tbw + p2
    m3 = 2 * tbw + p3

    # conv1 + ReLU: one MXU GEMM on the wrapper-built im2col (K padded to 16).
    a1 = jnp.maximum(
        jnp.dot(xcol_ref[0], w1_ref[...], preferred_element_type=f32)
        + b1_ref[...], 0.0)                                    # (6*tbw+p1, 32)

    # conv2 + ReLU: taps folded into K via 9 shifted contiguous slices -> 1 GEMM.
    lhs2 = jnp.concatenate(
        [a1[di * tbw + dj * tb: di * tbw + dj * tb + m2, :]
         for di in range(3) for dj in range(3)], axis=1)       # (m2, 288)
    a2 = jnp.maximum(
        jnp.dot(lhs2, w2_ref[...], preferred_element_type=f32)
        + b2_ref[...], 0.0)                                    # (m2, 64)

    # conv3 + ReLU (only the rows surviving the floor-mode pool are computed).
    lhs3 = jnp.concatenate(
        [a2[di * tbw + dj * tb: di * tbw + dj * tb + m3, :]
         for di in range(3) for dj in range(3)], axis=1)       # (m3, 576)
    a3 = jnp.maximum(
        jnp.dot(lhs3, w3_ref[...], preferred_element_type=f32)
        + b3_ref[...], 0.0)                                    # (m3, 64)

    # 2x2/2 max-pool (floor) fused with torch.flatten: two elementwise maxes,
    # then Wp contiguous-slice lane-concats (fc1 weights pre-permuted to match).
    rmax = jnp.maximum(a3[0:tbw + p3, :], a3[tbw:2 * tbw + p3, :])
    hmax = jnp.maximum(rmax[0:tbw, :], rmax[tb:tbw + tb, :])    # (tbw, 64)
    feat = jnp.concatenate(
        [hmax[2 * p * tb:(2 * p + 1) * tb, :] for p in range(wp)],
        axis=1)                                                # (tb, wp*64)

    # TODO(synk): F.dropout (p=0.25 / 0.5, training-mode default) is stochastic;
    # treated as identity (inference semantics).

    h1 = jnp.maximum(
        jnp.dot(feat, fc1w_ref[...], preferred_element_type=f32)
        + fc1b_ref[...], 0.0)                                  # (tb, 256)
    logits = jnp.dot(h1, fc2w_ref[...],
                     preferred_element_type=f32) + fc2b_ref[...]  # (tb, 132)

    # view(-1, 6, 22): stack the 6 strings on sublanes -> single softmax pass.
    seg = jnp.concatenate(
        [logits[:, _NFRET * g: _NFRET * (g + 1)] for g in range(_NSTR)],
        axis=0)                                                # (6*tb, 22)
    if use_final_layer:
        m = jnp.max(seg, axis=-1, keepdims=True)
        e = jnp.exp(seg - m)
        s = jnp.sum(e, axis=-1, keepdims=True)
        r = pl.reciprocal(s, approx=True)                      # EUP slot
        r = r * (2.0 - s * r)                                  # Newton step
        seg = e * r
    o_ref[0] = seg


# ----------------------------------------------------------------------------
# One-time parameter preprocessing (PyTorch layouts -> kernel layouts)
# ----------------------------------------------------------------------------
def preprocess_params(params, context, spec_size):
    Hp = (context - 6) // 2
    Wp = (spec_size - 6) // 2
    assert Hp == 1, "TabCNN geometry requires context in {8, 9}"
    feat = Hp * Wp * _C3
    fc1_w = jnp.asarray(params["fc1_w"], jnp.float32)
    assert fc1_w.shape[1] == feat, "fc1 in_features does not match geometry"

    w1 = jnp.transpose(jnp.asarray(params["conv1_w"], jnp.float32)[:, 0],
                       (1, 2, 0)).reshape(9, _C1)
    w1 = jnp.pad(w1, ((0, _K1P - 9), (0, 0)))
    return dict(
        w1=w1,
        b1=jnp.asarray(params["conv1_b"], jnp.float32).reshape(1, _C1),
        w2=jnp.transpose(jnp.asarray(params["conv2_w"], jnp.float32),
                         (2, 3, 1, 0)).reshape(9 * _C1, _C2),
        b2=jnp.asarray(params["conv2_b"], jnp.float32).reshape(1, _C2),
        w3=jnp.transpose(jnp.asarray(params["conv3_w"], jnp.float32),
                         (2, 3, 1, 0)).reshape(9 * _C2, _C3),
        b3=jnp.asarray(params["conv3_b"], jnp.float32).reshape(1, _C3),
        # fc1: (out, in) with in-order (c, h, w) -> (in, out) with in-order
        # (h, w, c) to match the kernel's pooled (wp, c) lane order.
        fc1w=jnp.transpose(fc1_w.reshape(256, _C3, Hp, Wp),
                           (2, 3, 1, 0)).reshape(feat, 256),
        fc1b=jnp.asarray(params["fc1_b"], jnp.float32).reshape(1, 256),
        fc2w=jnp.asarray(params["fc2_w"], jnp.float32).T,
        fc2b=jnp.asarray(params["fc2_b"], jnp.float32).reshape(1, 132),
    )


# ----------------------------------------------------------------------------
# Forward wrapper — single fused pallas_call, batch-blocked grid
# ----------------------------------------------------------------------------
def tabcnn_forward(x_nchw, kp, use_final_layer=True):
    N, Cin, Hc, Ws = x_nchw.shape
    assert Cin == 1
    Hp = (Hc - 6) // 2
    Wp = (Ws - 6) // 2
    assert Hp == 1, "TabCNN geometry requires context in {8, 9}"
    assert kp["fc1w"].shape[0] == Wp * _C3, "params do not match input geometry"

    tb = _pick_tb(N, Ws)
    G = -(-N // tb)
    n_pad = G * tb
    p1, p2, p3 = _pads(tb)
    tbw = tb * Ws
    m1 = 6 * tbw + p1
    m2 = 4 * tbw + p2
    m3 = 2 * tbw + p3

    # ---- wrapper-side conv1 im2col (layout plumbing only, tiny input):
    # row index r1*tbw + w*tb + s, tap index k = di*3+dj (padded to 16 lanes).
    x2 = x_nchw[:, 0].astype(jnp.float32)
    if n_pad != N:
        x2 = jnp.pad(x2, ((0, n_pad - N), (0, 0), (0, 0)))
    xp = jnp.pad(x2, ((0, 0), (0, 0), (0, 2)))
    cols = jnp.stack([xp[:, di:di + 6, dj:dj + Ws]
                      for di in range(3) for dj in range(3)], axis=-1)
    cols = jnp.pad(cols, ((0, 0), (0, 0), (0, 0), (0, _K1P - 9)))
    cols = cols.reshape(G, tb, 6, Ws, _K1P).transpose(0, 2, 3, 1, 4)
    cols = cols.reshape(G, 6 * tbw, _K1P)
    cols = jnp.pad(cols, ((0, 0), (0, p1), (0, 0)))            # (G, m1, 16)

    args = (cols, kp["w1"], kp["b1"], kp["w2"], kp["b2"], kp["w3"], kp["b3"],
            kp["fc1w"], kp["fc1b"], kp["fc2w"], kp["fc2b"])

    def _const(shape):
        nd = len(shape)
        return pl.BlockSpec(shape, lambda g, _nd=nd: (0,) * _nd)

    in_specs = [pl.BlockSpec((1, m1, _K1P), lambda g: (g, 0, 0))]
    in_specs += [_const(a.shape) for a in args[1:]]

    flops = 2 * G * (m1 * _K1P * _C1 + m2 * 9 * _C1 * _C2 + m3 * 9 * _C2 * _C3
                     + tb * Wp * _C3 * 256 + tb * 256 * 132)
    transcendentals = G * _NSTR * tb * _NFRET if use_final_layer else 0
    bytes_accessed = 4 * (G * m1 * _K1P
                          + sum(int(np.prod(a.shape)) for a in args[1:])
                          + G * _NSTR * tb * _NFRET)

    kern = functools.partial(_tabcnn_kernel, tb=tb, ws=Ws, wp=Wp,
                             use_final_layer=use_final_layer)
    out = pl.pallas_call(
        kern,
        grid=(G,),
        out_shape=jax.ShapeDtypeStruct((G, _NSTR * tb, _NFRET), jnp.float32),
        in_specs=in_specs,
        out_specs=pl.BlockSpec((1, _NSTR * tb, _NFRET), lambda g: (g, 0, 0)),
        compiler_params=pltpu.CompilerParams(
            dimension_semantics=("parallel",)),
        cost_estimate=pl.CostEstimate(flops=flops,
                                      transcendentals=transcendentals,
                                      bytes_accessed=bytes_accessed),
    )(*args)

    out = out.reshape(G, _NSTR, tb, _NFRET).transpose(0, 2, 1, 3)
    return out.reshape(n_pad, _NSTR, _NFRET)[:N]


# ----------------------------------------------------------------------------
# Deterministic parameter init (PyTorch-style uniform(-1/sqrt(fan_in), ...))
# ----------------------------------------------------------------------------
def init_params(key, spec_size):
    ks = jax.random.split(key, 10)

    def u(k, shape, fan_in):
        bound = 1.0 / float(np.sqrt(fan_in))
        return jax.random.uniform(k, shape, jnp.float32, -bound, bound)

    feat = (spec_size - 6) // 2 * 64
    return dict(
        conv1_w=u(ks[0], (32, 1, 3, 3), 1 * 9),
        conv1_b=u(ks[1], (32,), 1 * 9),
        conv2_w=u(ks[2], (64, 32, 3, 3), 32 * 9),
        conv2_b=u(ks[3], (64,), 32 * 9),
        conv3_w=u(ks[4], (64, 64, 3, 3), 64 * 9),
        conv3_b=u(ks[5], (64,), 64 * 9),
        fc1_w=u(ks[6], (256, feat), feat),
        fc1_b=u(ks[7], (256,), feat),
        fc2_w=u(ks[8], (132, 256), 256),
        fc2_b=u(ks[9], (132,), 256),
    )


# ----------------------------------------------------------------------------
# Pure-JAX reference (correctness check)
# ----------------------------------------------------------------------------
def tabcnn_reference(x_nchw, params, use_final_layer=True):
    x = jnp.transpose(x_nchw, (0, 2, 3, 1)).astype(jnp.float32)

    def conv(x, w, b):
        y = jax.lax.conv_general_dilated(
            x, jnp.transpose(w, (2, 3, 1, 0)), (1, 1), "VALID",
            dimension_numbers=("NHWC", "HWIO", "NHWC"),
            precision=jax.lax.Precision.HIGHEST)
        return jax.nn.relu(y + b)

    x = conv(x, params["conv1_w"], params["conv1_b"])
    x = conv(x, params["conv2_w"], params["conv2_b"])
    x = conv(x, params["conv3_w"], params["conv3_b"])
    x = jax.lax.reduce_window(x, -jnp.inf, jax.lax.max,
                              (1, 2, 2, 1), (1, 2, 2, 1), "VALID")
    N, Hp, Wp, C = x.shape
    x = jnp.transpose(x, (0, 3, 1, 2)).reshape(N, C * Hp * Wp)
    x = jax.nn.relu(jnp.dot(x, params["fc1_w"].T,
                            precision=jax.lax.Precision.HIGHEST) + params["fc1_b"])
    x = jnp.dot(x, params["fc2_w"].T,
                precision=jax.lax.Precision.HIGHEST) + params["fc2_b"]
    x = x.reshape(N, 6, 22)
    if use_final_layer:
        x = jax.nn.softmax(x, axis=2)
    return x


if __name__ == "__main__":
    batch, context, spec_size = 2, 9, 16   # small geometry consistent with TabCNN
    key = jax.random.PRNGKey(0)
    kx, kparam = jax.random.split(key)
    x = jax.random.normal(kx, (batch, 1, context, spec_size), jnp.float32)
    params = init_params(kparam, spec_size)
    kp = preprocess_params(params, context, spec_size)   # one-time weight re-layout

    fwd = jax.jit(tabcnn_forward, static_argnames=("use_final_layer",))
    out = jax.block_until_ready(fwd(x, kp, use_final_layer=True))
    assert out.shape == (batch, 6, 22)

    ref = tabcnn_reference(x, params, use_final_layer=True)
    np.testing.assert_allclose(np.asarray(out), np.asarray(ref),
                               atol=2e-3, rtol=2e-3)
    print("KERNEL_OK")
</pallas_src>

<mosaic_0001>
module attributes {stable_mosaic.version = 11 : i64} {
  func.func @_tabcnn_kernel(%arg0: i32, %arg1: memref<1x120x16xf32, #tpu.memory_space<vmem>>, %arg2: memref<16x32xf32, #tpu.memory_space<vmem>>, %arg3: memref<1x32xf32, #tpu.memory_space<vmem>>, %arg4: memref<288x64xf32, #tpu.memory_space<vmem>>, %arg5: memref<1x64xf32, #tpu.memory_space<vmem>>, %arg6: memref<576x64xf32, #tpu.memory_space<vmem>>, %arg7: memref<1x64xf32, #tpu.memory_space<vmem>>, %arg8: memref<320x256xf32, #tpu.memory_space<vmem>>, %arg9: memref<1x256xf32, #tpu.memory_space<vmem>>, %arg10: memref<256x132xf32, #tpu.memory_space<vmem>>, %arg11: memref<1x132xf32, #tpu.memory_space<vmem>>, %arg12: memref<1x6x22xf32, #tpu.memory_space<vmem>>) attributes {dimension_semantics = [#tpu.dimension_semantics<parallel>], iteration_bounds = array<i64: 2>, scalar_prefetch = 0 : i64, scratch_operands = 0 : i64, tpu.core_type = #tpu.core_type<tc>, window_params = [{transform_indices = @transform_0, window_bounds = array<i64: 1, 120, 16>}, {pipeline_mode = #tpu.pipeline_mode<synchronous>, transform_indices = @transform_1, window_bounds = array<i64: 16, 32>}, {pipeline_mode = #tpu.pipeline_mode<synchronous>, transform_indices = @transform_2, window_bounds = array<i64: 1, 32>}, {pipeline_mode = #tpu.pipeline_mode<synchronous>, transform_indices = @transform_3, window_bounds = array<i64: 288, 64>}, {pipeline_mode = #tpu.pipeline_mode<synchronous>, transform_indices = @transform_4, window_bounds = array<i64: 1, 64>}, {pipeline_mode = #tpu.pipeline_mode<synchronous>, transform_indices = @transform_5, window_bounds = array<i64: 576, 64>}, {pipeline_mode = #tpu.pipeline_mode<synchronous>, transform_indices = @transform_6, window_bounds = array<i64: 1, 64>}, {pipeline_mode = #tpu.pipeline_mode<synchronous>, transform_indices = @transform_7, window_bounds = array<i64: 320, 256>}, {pipeline_mode = #tpu.pipeline_mode<synchronous>, transform_indices = @transform_8, window_bounds = array<i64: 1, 256>}, {pipeline_mode = #tpu.pipeline_mode<synchronous>, transform_indices = @transform_9, window_bounds = array<i64: 256, 132>}, {pipeline_mode = #tpu.pipeline_mode<synchronous>, transform_indices = @transform_10, window_bounds = array<i64: 1, 132>}, {transform_indices = @transform_11, window_bounds = array<i64: 1, 6, 22>}]} {
    %c0 = arith.constant 0 : index
    %c0_0 = arith.constant 0 : index
    %c0_1 = arith.constant 0 : index
    %0 = vector.load %arg1[%c0, %c0_0, %c0_1] : memref<1x120x16xf32, #tpu.memory_space<vmem>>, vector<1x120x16xf32>
    %1 = vector.shape_cast %0 : vector<1x120x16xf32> to vector<120x16xf32>
    %c0_2 = arith.constant 0 : index
    %c0_3 = arith.constant 0 : index
    %2 = vector.load %arg2[%c0_2, %c0_3] : memref<16x32xf32, #tpu.memory_space<vmem>>, vector<16x32xf32>
    %cst = arith.constant dense<0.000000e+00> : vector<120x32xf32>
    %3 = tpu.matmul %1, %2, %cst {dimension_numbers = #tpu.dot_dimension_numbers<[1], [0], [0], [1], [0, 0, 1, 1], [], []>} : vector<120x16xf32>, vector<16x32xf32>, vector<120x32xf32> -> vector<120x32xf32>
    %c0_4 = arith.constant 0 : index
    %c0_5 = arith.constant 0 : index
    %4 = vector.load %arg3[%c0_4, %c0_5] : memref<1x32xf32, #tpu.memory_space<vmem>>, vector<1x32xf32>
    %5 = vector.broadcast %4 : vector<1x32xf32> to vector<120x32xf32>
    %6 = arith.addf %3, %5 : vector<120x32xf32>
    %cst_6 = arith.constant 0.000000e+00 : f32
    %7 = vector.broadcast %cst_6 : f32 to vector<120x32xf32>
    %8 = arith.maximumf %6, %7 : vector<120x32xf32>
    %9 = vector.extract_strided_slice %8 {offsets = [0, 0], sizes = [80, 32], strides = [1, 1]} : vector<120x32xf32> to vector<80x32xf32>
    %10 = vector.extract_strided_slice %8 {offsets = [1, 0], sizes = [80, 32], strides = [1, 1]} : vector<120x32xf32> to vector<80x32xf32>
    %11 = vector.extract_strided_slice %8 {offsets = [2, 0], sizes = [80, 32], strides = [1, 1]} : vector<120x32xf32> to vector<80x32xf32>
    %12 = vector.extract_strided_slice %8 {offsets = [16, 0], sizes = [80, 32], strides = [1, 1]} : vector<120x32xf32> to vector<80x32xf32>
    %13 = vector.extract_strided_slice %8 {offsets = [17, 0], sizes = [80, 32], strides = [1, 1]} : vector<120x32xf32> to vector<80x32xf32>
    %14 = vector.extract_strided_slice %8 {offsets = [18, 0], sizes = [80, 32], strides = [1, 1]} : vector<120x32xf32> to vector<80x32xf32>
    %15 = vector.extract_strided_slice %8 {offsets = [32, 0], sizes = [80, 32], strides = [1, 1]} : vector<120x32xf32> to vector<80x32xf32>
    %16 = vector.extract_strided_slice %8 {offsets = [33, 0], sizes = [80, 32], strides = [1, 1]} : vector<120x32xf32> to vector<80x32xf32>
    %17 = vector.extract_strided_slice %8 {offsets = [34, 0], sizes = [80, 32], strides = [1, 1]} : vector<120x32xf32> to vector<80x32xf32>
    %18 = tpu.concatenate %9, %10, %11, %12, %13, %14, %15, %16, %17 in 1 : vector<80x32xf32>, vector<80x32xf32>, vector<80x32xf32>, vector<80x32xf32>, vector<80x32xf32>, vector<80x32xf32>, vector<80x32xf32>, vector<80x32xf32>, vector<80x32xf32> -> vector<80x288xf32>
    %c0_7 = arith.constant 0 : index
    %c0_8 = arith.constant 0 : index
    %19 = vector.load %arg4[%c0_7, %c0_8] : memref<288x64xf32, #tpu.memory_space<vmem>>, vector<288x64xf32>
    %cst_9 = arith.constant dense<0.000000e+00> : vector<80x64xf32>
    %20 = tpu.matmul %18, %19, %cst_9 {dimension_numbers = #tpu.dot_dimension_numbers<[1], [0], [0], [1], [0, 0, 1, 1], [], []>} : vector<80x288xf32>, vector<288x64xf32>, vector<80x64xf32> -> vector<80x64xf32>
    %c0_10 = arith.constant 0 : index
    %c0_11 = arith.constant 0 : index
    %21 = vector.load %arg5[%c0_10, %c0_11] : memref<1x64xf32, #tpu.memory_space<vmem>>, vector<1x64xf32>
    %22 = vector.broadcast %21 : vector<1x64xf32> to vector<80x64xf32>
    %23 = arith.addf %20, %22 : vector<80x64xf32>
    %cst_12 = arith.constant 0.000000e+00 : f32
    %24 = vector.broadcast %cst_12 : f32 to vector<80x64xf32>
    %25 = arith.maximumf %23, %24 : vector<80x64xf32>
    %26 = vector.extract_strided_slice %25 {offsets = [0, 0], sizes = [40, 64], strides = [1, 1]} : vector<80x64xf32> to vector<40x64xf32>
    %27 = vector.extract_strided_slice %25 {offsets = [1, 0], sizes = [40, 64], strides = [1, 1]} : vector<80x64xf32> to vector<40x64xf32>
    %28 = vector.extract_strided_slice %25 {offsets = [2, 0], sizes = [40, 64], strides = [1, 1]} : vector<80x64xf32> to vector<40x64xf32>
    %29 = vector.extract_strided_slice %25 {offsets = [16, 0], sizes = [40, 64], strides = [1, 1]} : vector<80x64xf32> to vector<40x64xf32>
    %30 = vector.extract_strided_slice %25 {offsets = [17, 0], sizes = [40, 64], strides = [1, 1]} : vector<80x64xf32> to vector<40x64xf32>
    %31 = vector.extract_strided_slice %25 {offsets = [18, 0], sizes = [40, 64], strides = [1, 1]} : vector<80x64xf32> to vector<40x64xf32>
    %32 = vector.extract_strided_slice %25 {offsets = [32, 0], sizes = [40, 64], strides = [1, 1]} : vector<80x64xf32> to vector<40x64xf32>
    %33 = vector.extract_strided_slice %25 {offsets = [33, 0], sizes = [40, 64], strides = [1, 1]} : vector<80x64xf32> to vector<40x64xf32>
    %34 = vector.extract_strided_slice %25 {offsets = [34, 0], sizes = [40, 64], strides = [1, 1]} : vector<80x64xf32> to vector<40x64xf32>
    %35 = tpu.concatenate %26, %27, %28, %29, %30, %31, %32, %33, %34 in 1 : vector<40x64xf32>, vector<40x64xf32>, vector<40x64xf32>, vector<40x64xf32>, vector<40x64xf32>, vector<40x64xf32>, vector<40x64xf32>, vector<40x64xf32>, vector<40x64xf32> -> vector<40x576xf32>
    %c0_13 = arith.constant 0 : index
    %c0_14 = arith.constant 0 : index
    %36 = vector.load %arg6[%c0_13, %c0_14] : memref<576x64xf32, #tpu.memory_space<vmem>>, vector<576x64xf32>
    %cst_15 = arith.constant dense<0.000000e+00> : vector<40x64xf32>
    %37 = tpu.matmul %35, %36, %cst_15 {dimension_numbers = #tpu.dot_dimension_numbers<[1], [0], [0], [1], [0, 0, 1, 1], [], []>} : vector<40x576xf32>, vector<576x64xf32>, vector<40x64xf32> -> vector<40x64xf32>
    %c0_16 = arith.constant 0 : index
    %c0_17 = arith.constant 0 : index
    %38 = vector.load %arg7[%c0_16, %c0_17] : memref<1x64xf32, #tpu.memory_space<vmem>>, vector<1x64xf32>
    %39 = vector.broadcast %38 : vector<1x64xf32> to vector<40x64xf32>
    %40 = arith.addf %37, %39 : vector<40x64xf32>
    %cst_18 = arith.constant 0.000000e+00 : f32
    %41 = vector.broadcast %cst_18 : f32 to vector<40x64xf32>
    %42 = arith.maximumf %40, %41 : vector<40x64xf32>
    %43 = vector.extract_strided_slice %42 {offsets = [0, 0], sizes = [24, 64], strides = [1, 1]} : vector<40x64xf32> to vector<24x64xf32>
    %44 = vector.extract_strided_slice %42 {offsets = [16, 0], sizes = [24, 64], strides = [1, 1]} : vector<40x64xf32> to vector<24x64xf32>
    %45 = arith.maximumf %43, %44 : vector<24x64xf32>
    %46 = vector.extract_strided_slice %45 {offsets = [0, 0], sizes = [16, 64], strides = [1, 1]} : vector<24x64xf32> to vector<16x64xf32>
    %47 = vector.extract_strided_slice %45 {offsets = [1, 0], sizes = [16, 64], strides = [1, 1]} : vector<24x64xf32> to vector<16x64xf32>
    %48 = arith.maximumf %46, %47 : vector<16x64xf32>
    %49 = vector.extract_strided_slice %48 {offsets = [0, 0], sizes = [1, 64], strides = [1, 1]} : vector<16x64xf32> to vector<1x64xf32>
    %50 = vector.extract_strided_slice %48 {offsets = [2, 0], sizes = [1, 64], strides = [1, 1]} : vector<16x64xf32> to vector<1x64xf32>
    %51 = vector.extract_strided_slice %48 {offsets = [4, 0], sizes = [1, 64], strides = [1, 1]} : vector<16x64xf32> to vector<1x64xf32>
    %52 = vector.extract_strided_slice %48 {offsets = [6, 0], sizes = [1, 64], strides = [1, 1]} : vector<16x64xf32> to vector<1x64xf32>
    %53 = vector.extract_strided_slice %48 {offsets = [8, 0], sizes = [1, 64], strides = [1, 1]} : vector<16x64xf32> to vector<1x64xf32>
    %54 = tpu.concatenate %49, %50, %51, %52, %53 in 1 : vector<1x64xf32>, vector<1x64xf32>, vector<1x64xf32>, vector<1x64xf32>, vector<1x64xf32> -> vector<1x320xf32>
    %c0_19 = arith.constant 0 : index
    %c0_20 = arith.constant 0 : index
    %55 = vector.load %arg8[%c0_19, %c0_20] : memref<320x256xf32, #tpu.memory_space<vmem>>, vector<320x256xf32>
    %cst_21 = arith.constant dense<0.000000e+00> : vector<1x256xf32>
    %56 = tpu.matmul %54, %55, %cst_21 {dimension_numbers = #tpu.dot_dimension_numbers<[1], [0], [0], [1], [0, 0, 1, 1], [], []>} : vector<1x320xf32>, vector<320x256xf32>, vector<1x256xf32> -> vector<1x256xf32>
    %c0_22 = arith.constant 0 : index
    %c0_23 = arith.constant 0 : index
    %57 = vector.load %arg9[%c0_22, %c0_23] : memref<1x256xf32, #tpu.memory_space<vmem>>, vector<1x256xf32>
    %58 = arith.addf %56, %57 : vector<1x256xf32>
    %cst_24 = arith.constant 0.000000e+00 : f32
    %59 = vector.broadcast %cst_24 : f32 to vector<1x256xf32>
    %60 = arith.maximumf %58, %59 : vector<1x256xf32>
    %c0_25 = arith.constant 0 : index
    %c0_26 = arith.constant 0 : index
    %61 = vector.load %arg10[%c0_25, %c0_26] : memref<256x132xf32, #tpu.memory_space<vmem>>, vector<256x132xf32>
    %cst_27 = arith.constant dense<0.000000e+00> : vector<1x132xf32>
    %62 = tpu.matmul %60, %61, %cst_27 {dimension_numbers = #tpu.dot_dimension_numbers<[1], [0], [0], [1], [0, 0, 1, 1], [], []>} : vector<1x256xf32>, vector<256x132xf32>, vector<1x132xf32> -> vector<1x132xf32>
    %c0_28 = arith.constant 0 : index
    %c0_29 = arith.constant 0 : index
    %63 = vector.load %arg11[%c0_28, %c0_29] : memref<1x132xf32, #tpu.memory_space<vmem>>, vector<1x132xf32>
    %64 = arith.addf %62, %63 : vector<1x132xf32>
    %65 = vector.extract_strided_slice %64 {offsets = [0, 0], sizes = [1, 22], strides = [1, 1]} : vector<1x132xf32> to vector<1x22xf32>
    %66 = vector.extract_strided_slice %64 {offsets = [0, 22], sizes = [1, 22], strides = [1, 1]} : vector<1x132xf32> to vector<1x22xf32>
    %67 = vector.extract_strided_slice %64 {offsets = [0, 44], sizes = [1, 22], strides = [1, 1]} : vector<1x132xf32> to vector<1x22xf32>
    %68 = vector.extract_strided_slice %64 {offsets = [0, 66], sizes = [1, 22], strides = [1, 1]} : vector<1x132xf32> to vector<1x22xf32>
    %69 = vector.extract_strided_slice %64 {offsets = [0, 88], sizes = [1, 22], strides = [1, 1]} : vector<1x132xf32> to vector<1x22xf32>
    %70 = vector.extract_strided_slice %64 {offsets = [0, 110], sizes = [1, 22], strides = [1, 1]} : vector<1x132xf32> to vector<1x22xf32>
    %71 = tpu.concatenate %65, %66, %67, %68, %69, %70 in 0 : vector<1x22xf32>, vector<1x22xf32>, vector<1x22xf32>, vector<1x22xf32>, vector<1x22xf32>, vector<1x22xf32> -> vector<6x22xf32>
    %cst_30 = arith.constant dense<0xFF800000> : vector<6xf32>
    %72 = vector.multi_reduction <maximumf>, %71, %cst_30 [1] : vector<6x22xf32> to vector<6xf32>
    %73 = vector.shape_cast %72 : vector<6xf32> to vector<6x1xf32>
    %74 = vector.broadcast %73 : vector<6x1xf32> to vector<6x22xf32>
    %75 = arith.subf %71, %74 : vector<6x22xf32>
    %76 = math.exp %75 : vector<6x22xf32>
    %cst_31 = arith.constant dense<0.000000e+00> : vector<6xf32>
    %77 = vector.multi_reduction <add>, %76, %cst_31 [1] : vector<6x22xf32> to vector<6xf32>
    %78 = vector.shape_cast %77 : vector<6xf32> to vector<6x1xf32>
    %79 = tpu.reciprocal %78 {approx = true} : vector<6x1xf32> -> vector<6x1xf32>
    %80 = arith.mulf %78, %79 : vector<6x1xf32>
    %cst_32 = arith.constant 2.000000e+00 : f32
    %81 = vector.broadcast %cst_32 : f32 to vector<6x1xf32>
    %82 = arith.subf %81, %80 : vector<6x1xf32>
    %83 = arith.mulf %79, %82 : vector<6x1xf32>
    %84 = vector.broadcast %83 : vector<6x1xf32> to vector<6x22xf32>
    %85 = arith.mulf %76, %84 : vector<6x22xf32>
    %c0_33 = arith.constant 0 : index
    %c0_34 = arith.constant 0 : index
    %c0_35 = arith.constant 0 : index
    %86 = vector.load %arg12[%c0_33, %c0_34, %c0_35] : memref<1x6x22xf32, #tpu.memory_space<vmem>>, vector<1x6x22xf32>
    %87 = vector.shape_cast %86 : vector<1x6x22xf32> to vector<6x22xf32>
    %88 = vector.shape_cast %85 : vector<6x22xf32> to vector<1x6x22xf32>
    tpu.vector_store %arg12[%c0_33, %c0_34, %c0_35], %88 {strides = array<i32>} : memref<1x6x22xf32, #tpu.memory_space<vmem>>, vector<1x6x22xf32>,
    return
  }
  func.func @transform_0(%arg0: i32) -> (i32, i32, i32) {
    %c0_i32 = arith.constant 0 : i32
    %c0_i32_0 = arith.constant 0 : i32
    %c0_i32_1 = arith.constant 0 : i32
    return %arg0, %c0_i32, %c0_i32_0 : i32, i32, i32
  }
  func.func @transform_1(%arg0: i32) -> (i32, i32) {
    %c0_i32 = arith.constant 0 : i32
    %c0_i32_0 = arith.constant 0 : i32
    %c0_i32_1 = arith.constant 0 : i32
    return %c0_i32, %c0_i32_0 : i32, i32
  }
  func.func @transform_2(%arg0: i32) -> (i32, i32) {
    %c0_i32 = arith.constant 0 : i32
    %c0_i32_0 = arith.constant 0 : i32
    %c0_i32_1 = arith.constant 0 : i32
    return %c0_i32, %c0_i32_0 : i32, i32
  }
  func.func @transform_3(%arg0: i32) -> (i32, i32) {
    %c0_i32 = arith.constant 0 : i32
    %c0_i32_0 = arith.constant 0 : i32
    %c0_i32_1 = arith.constant 0 : i32
    return %c0_i32, %c0_i32_0 : i32, i32
  }
  func.func @transform_4(%arg0: i32) -> (i32, i32) {
    %c0_i32 = arith.constant 0 : i32
    %c0_i32_0 = arith.constant 0 : i32
    %c0_i32_1 = arith.constant 0 : i32
    return %c0_i32, %c0_i32_0 : i32, i32
  }
  func.func @transform_5(%arg0: i32) -> (i32, i32) {
    %c0_i32 = arith.constant 0 : i32
    %c0_i32_0 = arith.constant 0 : i32
    %c0_i32_1 = arith.constant 0 : i32
    return %c0_i32, %c0_i32_0 : i32, i32
  }
  func.func @transform_6(%arg0: i32) -> (i32, i32) {
    %c0_i32 = arith.constant 0 : i32
    %c0_i32_0 = arith.constant 0 : i32
    %c0_i32_1 = arith.constant 0 : i32
    return %c0_i32, %c0_i32_0 : i32, i32
  }
  func.func @transform_7(%arg0: i32) -> (i32, i32) {
    %c0_i32 = arith.constant 0 : i32
    %c0_i32_0 = arith.constant 0 : i32
    %c0_i32_1 = arith.constant 0 : i32
    return %c0_i32, %c0_i32_0 : i32, i32
  }
  func.func @transform_8(%arg0: i32) -> (i32, i32) {
    %c0_i32 = arith.constant 0 : i32
    %c0_i32_0 = arith.constant 0 : i32
    %c0_i32_1 = arith.constant 0 : i32
    return %c0_i32, %c0_i32_0 : i32, i32
  }
  func.func @transform_9(%arg0: i32) -> (i32, i32) {
    %c0_i32 = arith.constant 0 : i32
    %c0_i32_0 = arith.constant 0 : i32
    %c0_i32_1 = arith.constant 0 : i32
    return %c0_i32, %c0_i32_0 : i32, i32
  }
  func.func @transform_10(%arg0: i32) -> (i32, i32) {
    %c0_i32 = arith.constant 0 : i32
    %c0_i32_0 = arith.constant 0 : i32
    %c0_i32_1 = arith.constant 0 : i32
    return %c0_i32, %c0_i32_0 : i32, i32
  }
  func.func @transform_11(%arg0: i32) -> (i32, i32, i32) {
    %c0_i32 = arith.constant 0 : i32
    %c0_i32_0 = arith.constant 0 : i32
    %c0_i32_1 = arith.constant 0 : i32
    return %arg0, %c0_i32, %c0_i32_0 : i32, i32, i32
  }
}

</mosaic_0001>

<llo_original>
// kernel: tabcnn_forward.1
$region0: #{tabcnn_forward.1}
  #allocation0 [shape = 'u32[]', space=smem, size = 0x4, offset = 0x4, fixed_abs, tag = 'smem constant byte address 0x4 - core index']
  #allocation1 [shape = 'u32[144,128]{1,0:T(1,128)}', space=vmem, size = 0x12000, scoped, tag = 'internal scratch']
  %s0 = inlined_call_operand.vmem [shape: f32[2,120,16], index: 0, kind: input, shape index: {}]
  %s1 = inlined_call_operand.vmem [shape: f32[16,32], index: 1, kind: input, shape index: {}]
  %s2 = inlined_call_operand.vmem [shape: f32[1,32], index: 2, kind: input, shape index: {}]
  %s3 = inlined_call_operand.vmem [shape: f32[288,64], index: 3, kind: input, shape index: {}]
  %s4 = inlined_call_operand.vmem [shape: f32[1,64], index: 4, kind: input, shape index: {}]
  %s5 = inlined_call_operand.vmem [shape: f32[576,64], index: 5, kind: input, shape index: {}]
  %s6 = inlined_call_operand.vmem [shape: f32[1,64], index: 6, kind: input, shape index: {}]
  %s7 = inlined_call_operand.vmem [shape: f32[320,256], index: 7, kind: input, shape index: {}]
  %s8 = inlined_call_operand.vmem [shape: f32[1,256], index: 8, kind: input, shape index: {}]
  %s9 = inlined_call_operand.vmem [shape: f32[256,132], index: 9, kind: input, shape index: {}]
  %s10 = inlined_call_operand.vmem [shape: f32[1,132], index: 10, kind: input, shape index: {}]
  %s11 = inlined_call_operand.vmem [shape: f32[2,6,22], index: 11, kind: output, shape index: {}]
  %s12 = sld [smem:[#allocation0]]
  $region77: #{tabcnn_forward.1} parent=0
    _
  %s14 = ssub.s32 1, %s12
  %s15 = scalar_select 0, %s14, %s12
  loop: start=0, step=1, limit=4
  $region2: #{tabcnn_forward.1} parent=0 // loop_pre_header
    _
  $region3: #{tabcnn_forward.1} parent=0 // loop_header
    %s17 = sphi 0, %s21
    %p18 = scmp.ge.s32.totalorder %s17, 4
    %s27 = sphi 0, %s29
    %s30 = sphi 0, %s27
    %s31 = sphi 0, %s30
    %s47 = sphi 0, %s31
    %s51 = sphi 0, %s51
    %s53 = sphi 0, %s51
    %s54 = sphi 0, %s53
    %s68 = sphi 0, %s54
    %s72 = sphi 0, %s72
    %s74 = sphi 0, %s72
    %s75 = sphi 0, %s74
    %s89 = sphi 0, %s75
    %s93 = sphi 0, %s93
    %s95 = sphi 0, %s93
    %s96 = sphi 0, %s95
    %s110 = sphi 0, %s96
    %s114 = sphi 0, %s114
    %s116 = sphi 0, %s114
    %s117 = sphi 0, %s116
    %s131 = sphi 0, %s117
    %s135 = sphi 0, %s135
    %s137 = sphi 0, %s135
    %s138 = sphi 0, %s137
    %s152 = sphi 0, %s138
    %s156 = sphi 0, %s156
    %s158 = sphi 0, %s156
    %s159 = sphi 0, %s158
    %s173 = sphi 0, %s159
    %s177 = sphi 0, %s177
    %s179 = sphi 0, %s177
    %s180 = sphi 0, %s179
    %s194 = sphi 0, %s180
    %s198 = sphi 0, %s198
    %s200 = sphi 0, %s198
    %s201 = sphi 0, %s200
    %s215 = sphi 0, %s201
    %s219 = sphi 0, %s219
    %s221 = sphi 0, %s219
    %s222 = sphi 0, %s221
    %s236 = sphi 0, %s222
    %s240 = sphi 0, %s240
    %s242 = sphi 0, %s240
    %s243 = sphi 0, %s242
    %s257 = sphi 0, %s243
    %s263 = sphi 0, %s265
    %s266 = sphi 0, %s263
    %s267 = sphi 0, %s266
    %s283 = sphi 0, %s267
  $region4: #{tabcnn_forward.1} parent=0 // loop_header_branch
    %20 = sbr.rel (%p18) target = $region8
  $region5: #{tabcnn_forward.1} parent=0 // loop_body
    %s22 = ssub.s32 %s17, 1
    %s23 = ssub.s32 %s17, 2
    %s24 = sadd.s32 %s17, 1
    %s25 = ssub.s32 %s17, %s24
    %p26 = scmp.eq.s32.totalorder %s25, 0
    %s28 = sadd.s32 %s27, 1
    %s29 = scalar_select %p26, %s27, %s28
    %p32 = pneg %p26
    %p33 = scmp.eq.s32.totalorder %s17, 1
    %p34 = por %p32, %p33
    %p35 = scmp.ne.s32.totalorder %s27, %s30
    %p36 = scmp.eq.s32.totalorder %s17, 0
    %p37 = por %p35, %p36
    %p38 = scmp.ne.s32.totalorder %s27, %s30
    %p39 = scmp.eq.s32.totalorder %s22, 1
    %p40 = por %p38, %p39
    %p41 = scmp.ne.s32.totalorder %s30, %s31
    %p42 = scmp.eq.s32.totalorder %s22, 0
    %p43 = por %p41, %p42
    %p44 = scmp.ne.s32.totalorder %s30, %s31
    %p45 = scmp.eq.s32.totalorder %s23, 1
    %p46 = por %p44, %p45
    %p48 = scmp.ne.s32.totalorder %s31, %s47
    %p49 = scmp.eq.s32.totalorder %s23, 0
    %p50 = por %p48, %p49
    %s52 = sadd.s32 %s51, 1
    %p55 = scmp.eq.s32.totalorder %s17, 1
    %p56 = scmp.ne.s32.totalorder %s51, %s53
    %p57 = scmp.eq.s32.totalorder %s17, 0
    %p58 = por %p56, %p57
    %p59 = scmp.ne.s32.totalorder %s51, %s53
    %p60 = scmp.eq.s32.totalorder %s22, 1
    %p61 = por %p59, %p60
    %p62 = scmp.ne.s32.totalorder %s53, %s54
    %p63 = scmp.eq.s32.totalorder %s22, 0
    %p64 = por %p62, %p63
    %p65 = scmp.ne.s32.totalorder %s53, %s54
    %p66 = scmp.eq.s32.totalorder %s23, 1
    %p67 = por %p65, %p66
    %p69 = scmp.ne.s32.totalorder %s54, %s68
    %p70 = scmp.eq.s32.totalorder %s23, 0
    %p71 = por %p69, %p70
    %s73 = sadd.s32 %s72, 1
    %p76 = scmp.eq.s32.totalorder %s17, 1
    %p77 = scmp.ne.s32.totalorder %s72, %s74
    %p78 = scmp.eq.s32.totalorder %s17, 0
    %p79 = por %p77, %p78
    %p80 = scmp.ne.s32.totalorder %s72, %s74
    %p81 = scmp.eq.s32.totalorder %s22, 1
    %p82 = por %p80, %p81
    %p83 = scmp.ne.s32.totalorder %s74, %s75
    %p84 = scmp.eq.s32.totalorder %s22, 0
    %p85 = por %p83, %p84
    %p86 = scmp.ne.s32.totalorder %s74, %s75
    %p87 = scmp.eq.s32.totalorder %s23, 1
    %p88 = por %p86, %p87
    %p90 = scmp.ne.s32.totalorder %s75, %s89
    %p91 = scmp.eq.s32.totalorder %s23, 0
    %p92 = por %p90, %p91
    %s94 = sadd.s32 %s93, 1
    %p97 = scmp.eq.s32.totalorder %s17, 1
    %p98 = scmp.ne.s32.totalorder %s93, %s95
    %p99 = scmp.eq.s32.totalorder %s17, 0
    %p100 = por %p98, %p99
    %p101 = scmp.ne.s32.totalorder %s93, %s95
    %p102 = scmp.eq.s32.totalorder %s22, 1
    %p103 = por %p101, %p102
    %p104 = scmp.ne.s32.totalorder %s95, %s96
    %p105 = scmp.eq.s32.totalorder %s22, 0
    %p106 = por %p104, %p105
    %p107 = scmp.ne.s32.totalorder %s95, %s96
    %p108 = scmp.eq.s32.totalorder %s23, 1
    %p109 = por %p107, %p108
    %p111 = scmp.ne.s32.totalorder %s96, %s110
    %p112 = scmp.eq.s32.totalorder %s23, 0
    %p113 = por %p111, %p112
    %s115 = sadd.s32 %s114, 1
    %p118 = scmp.eq.s32.totalorder %s17, 1
    %p119 = scmp.ne.s32.totalorder %s114, %s116
    %p120 = scmp.eq.s32.totalorder %s17, 0
    %p121 = por %p119, %p120
    %p122 = scmp.ne.s32.totalorder %s114, %s116
    %p123 = scmp.eq.s32.totalorder %s22, 1
    %p124 = por %p122, %p123
    %p125 = scmp.ne.s32.totalorder %s116, %s117
    %p126 = scmp.eq.s32.totalorder %s22, 0
    %p127 = por %p125, %p126
    %p128 = scmp.ne.s32.totalorder %s116, %s117
    %p129 = scmp.eq.s32.totalorder %s23, 1
    %p130 = por %p128, %p129
    %p132 = scmp.ne.s32.totalorder %s117, %s131
    %p133 = scmp.eq.s32.totalorder %s23, 0
    %p134 = por %p132, %p133
    %s136 = sadd.s32 %s135, 1
    %p139 = scmp.eq.s32.totalorder %s17, 1
    %p140 = scmp.ne.s32.totalorder %s135, %s137
    %p141 = scmp.eq.s32.totalorder %s17, 0
    %p142 = por %p140, %p141
    %p143 = scmp.ne.s32.totalorder %s135, %s137
    %p144 = scmp.eq.s32.totalorder %s22, 1
    %p145 = por %p143, %p144
    %p146 = scmp.ne.s32.totalorder %s137, %s138
    %p147 = scmp.eq.s32.totalorder %s22, 0
    %p148 = por %p146, %p147
    %p149 = scmp.ne.s32.totalorder %s137, %s138
    %p150 = scmp.eq.s32.totalorder %s23, 1
    %p151 = por %p149, %p150
    %p153 = scmp.ne.s32.totalorder %s138, %s152
    %p154 = scmp.eq.s32.totalorder %s23, 0
    %p155 = por %p153, %p154
    %s157 = sadd.s32 %s156, 1
    %p160 = scmp.eq.s32.totalorder %s17, 1
    %p161 = scmp.ne.s32.totalorder %s156, %s158
    %p162 = scmp.eq.s32.totalorder %s17, 0
    %p163 = por %p161, %p162
    %p164 = scmp.ne.s32.totalorder %s156, %s158
    %p165 = scmp.eq.s32.totalorder %s22, 1
    %p166 = por %p164, %p165
    %p167 = scmp.ne.s32.totalorder %s158, %s159
    %p168 = scmp.eq.s32.totalorder %s22, 0
    %p169 = por %p167, %p168
    %p170 = scmp.ne.s32.totalorder %s158, %s159
    %p171 = scmp.eq.s32.totalorder %s23, 1
    %p172 = por %p170, %p171
    %p174 = scmp.ne.s32.totalorder %s159, %s173
    %p175 = scmp.eq.s32.totalorder %s23, 0
    %p176 = por %p174, %p175
    %s178 = sadd.s32 %s177, 1
    %p181 = scmp.eq.s32.totalorder %s17, 1
    %p182 = scmp.ne.s32.totalorder %s177, %s179
    %p183 = scmp.eq.s32.totalorder %s17, 0
    %p184 = por %p182, %p183
    %p185 = scmp.ne.s32.totalorder %s177, %s179
    %p186 = scmp.eq.s32.totalorder %s22, 1
    %p187 = por %p185, %p186
    %p188 = scmp.ne.s32.totalorder %s179, %s180
    %p189 = scmp.eq.s32.totalorder %s22, 0
    %p190 = por %p188, %p189
    %p191 = scmp.ne.s32.totalorder %s179, %s180
    %p192 = scmp.eq.s32.totalorder %s23, 1
    %p193 = por %p191, %p192
    %p195 = scmp.ne.s32.totalorder %s180, %s194
    %p196 = scmp.eq.s32.totalorder %s23, 0
    %p197 = por %p195, %p196
    %s199 = sadd.s32 %s198, 1
    %p202 = scmp.eq.s32.totalorder %s17, 1
    %p203 = scmp.ne.s32.totalorder %s198, %s200
    %p204 = scmp.eq.s32.totalorder %s17, 0
    %p205 = por %p203, %p204
    %p206 = scmp.ne.s32.totalorder %s198, %s200
    %p207 = scmp.eq.s32.totalorder %s22, 1
    %p208 = por %p206, %p207
    %p209 = scmp.ne.s32.totalorder %s200, %s201
    %p210 = scmp.eq.s32.totalorder %s22, 0
    %p211 = por %p209, %p210
    %p212 = scmp.ne.s32.totalorder %s200, %s201
    %p213 = scmp.eq.s32.totalorder %s23, 1
    %p214 = por %p212, %p213
    %p216 = scmp.ne.s32.totalorder %s201, %s215
    %p217 = scmp.eq.s32.totalorder %s23, 0
    %p218 = por %p216, %p217
    %s220 = sadd.s32 %s219, 1
    %p223 = scmp.eq.s32.totalorder %s17, 1
    %p224 = scmp.ne.s32.totalorder %s219, %s221
    %p225 = scmp.eq.s32.totalorder %s17, 0
    %p226 = por %p224, %p225
    %p227 = scmp.ne.s32.totalorder %s219, %s221
    %p228 = scmp.eq.s32.totalorder %s22, 1
    %p229 = por %p227, %p228
    %p230 = scmp.ne.s32.totalorder %s221, %s222
    %p231 = scmp.eq.s32.totalorder %s22, 0
    %p232 = por %p230, %p231
    %p233 = scmp.ne.s32.totalorder %s221, %s222
    %p234 = scmp.eq.s32.totalorder %s23, 1
    %p235 = por %p233, %p234
    %p237 = scmp.ne.s32.totalorder %s222, %s236
    %p238 = scmp.eq.s32.totalorder %s23, 0
    %p239 = por %p237, %p238
    %s241 = sadd.s32 %s240, 1
    %p244 = scmp.eq.s32.totalorder %s17, 1
    %p245 = scmp.ne.s32.totalorder %s240, %s242
    %p246 = scmp.eq.s32.totalorder %s17, 0
    %p247 = por %p245, %p246
    %p248 = scmp.ne.s32.totalorder %s240, %s242
    %p249 = scmp.eq.s32.totalorder %s22, 1
    %p250 = por %p248, %p249
    %p251 = scmp.ne.s32.totalorder %s242, %s243
    %p252 = scmp.eq.s32.totalorder %s22, 0
    %p253 = por %p251, %p252
    %p254 = scmp.ne.s32.totalorder %s242, %s243
    %p255 = scmp.eq.s32.totalorder %s23, 1
    %p256 = por %p254, %p255
    %p258 = scmp.ne.s32.totalorder %s243, %s257
    %p259 = scmp.eq.s32.totalorder %s23, 0
    %p260 = por %p258, %p259
    %s261 = ssub.s32 %s17, %s24
    %p262 = scmp.eq.s32.totalorder %s261, 0
    %s264 = sadd.s32 %s263, 1
    %s265 = scalar_select %p262, %s263, %s264
    %p268 = pneg %p262
    %p269 = scmp.eq.s32.totalorder %s17, 1
    %p270 = por %p268, %p269
    %p271 = scmp.ne.s32.totalorder %s263, %s266
    %p272 = scmp.eq.s32.totalorder %s17, 0
    %p273 = por %p271, %p272
    %p274 = scmp.ne.s32.totalorder %s263, %s266
    %p275 = scmp.eq.s32.totalorder %s22, 1
    %p276 = por %p274, %p275
    %p277 = scmp.ne.s32.totalorder %s266, %s267
    %p278 = scmp.eq.s32.totalorder %s22, 0
    %p279 = por %p277, %p278
    %p280 = scmp.ne.s32.totalorder %s266, %s267
    %p281 = scmp.eq.s32.totalorder %s23, 1
    %p282 = por %p280, %p281
    %p284 = scmp.ne.s32.totalorder %s267, %s283
    %p285 = scmp.eq.s32.totalorder %s23, 0
    %p286 = por %p284, %p285
    %p287 = scmp.le.s32.totalorder 1, %s17
    %p288 = scmp.lt.s32.totalorder %s17, 3
    %p289 = pnand %p287, %p288
    %p290 = pneg %p289
    // Predicated region
    $region9: #{tabcnn_forward.1} parent=5 // pred_check
      _
    $region10: #{tabcnn_forward.1} parent=5 // pred_check_branch
      %292 = sbr.rel (%p289) target = $region12
    $region11: #{tabcnn_forward.1} parent=5 // pred_region
      %s293 = ssub.s32 %s17, 1
      // Predicated region
      $region13: #{tabcnn_forward.1} parent=11 // pred_check
        %p294 = pneg %p64
      $region14: #{tabcnn_forward.1} parent=11 // pred_check_branch
        %296 = sbr.rel (%p294) target = $region16
      $region15: #{tabcnn_forward.1} parent=11 // pred_region
        _
      $region16: #{tabcnn_forward.1} parent=11 // pred_fallthru
        _
      // Predicated region
      $region17: #{tabcnn_forward.1} parent=11 // pred_check
        %p297 = pneg %p85
      $region18: #{tabcnn_forward.1} parent=11 // pred_check_branch
        %299 = sbr.rel (%p297) target = $region20
      $region19: #{tabcnn_forward.1} parent=11 // pred_region
        _
      $region20: #{tabcnn_forward.1} parent=11 // pred_fallthru
        _
      // Predicated region
      $region21: #{tabcnn_forward.1} parent=11 // pred_check
        %p300 = pneg %p106
      $region22: #{tabcnn_forward.1} parent=11 // pred_check_branch
        %302 = sbr.rel (%p300) target = $region24
      $region23: #{tabcnn_forward.1} parent=11 // pred_region
        _
      $region24: #{tabcnn_forward.1} parent=11 // pred_fallthru
        _
      // Predicated region
      $region25: #{tabcnn_forward.1} parent=11 // pred_check
        %p303 = pneg %p127
      $region26: #{tabcnn_forward.1} parent=11 // pred_check_branch
        %305 = sbr.rel (%p303) target = $region28
      $region27: #{tabcnn_forward.1} parent=11 // pred_region
        _
      $region28: #{tabcnn_forward.1} parent=11 // pred_fallthru
        _
      // Predicated region
      $region29: #{tabcnn_forward.1} parent=11 // pred_check
        %p306 = pneg %p148
      $region30: #{tabcnn_forward.1} parent=11 // pred_check_branch
        %308 = sbr.rel (%p306) target = $region32
      $region31: #{tabcnn_forward.1} parent=11 // pred_region
        _
      $region32: #{tabcnn_forward.1} parent=11 // pred_fallthru
        _
      // Predicated region
      $region33: #{tabcnn_forward.1} parent=11 // pred_check
        %p309 = pneg %p169
      $region34: #{tabcnn_forward.1} parent=11 // pred_check_branch
        %311 = sbr.rel (%p309) target = $region36
      $region35: #{tabcnn_forward.1} parent=11 // pred_region
        _
      $region36: #{tabcnn_forward.1} parent=11 // pred_fallthru
        _
      // Predicated region
      $region37: #{tabcnn_forward.1} parent=11 // pred_check
        %p312 = pneg %p190
      $region38: #{tabcnn_forward.1} parent=11 // pred_check_branch
        %314 = sbr.rel (%p312) target = $region40
      $region39: #{tabcnn_forward.1} parent=11 // pred_region
        _
      $region40: #{tabcnn_forward.1} parent=11 // pred_fallthru
        _
      // Predicated region
      $region41: #{tabcnn_forward.1} parent=11 // pred_check
        %p315 = pneg %p211
      $region42: #{tabcnn_forward.1} parent=11 // pred_check_branch
        %317 = sbr.rel (%p315) target = $region44
      $region43: #{tabcnn_forward.1} parent=11 // pred_region
        _
      $region44: #{tabcnn_forward.1} parent=11 // pred_fallthru
        _
      // Predicated region
      $region45: #{tabcnn_forward.1} parent=11 // pred_check
        %p318 = pneg %p232
      $region46: #{tabcnn_forward.1} parent=11 // pred_check_branch
        %320 = sbr.rel (%p318) target = $region48
      $region47: #{tabcnn_forward.1} parent=11 // pred_region
        _
      $region48: #{tabcnn_forward.1} parent=11 // pred_fallthru
        _
      // Predicated region
      $region49: #{tabcnn_forward.1} parent=11 // pred_check
        %p321 = pneg %p253
      $region50: #{tabcnn_forward.1} parent=11 // pred_check_branch
        %323 = sbr.rel (%p321) target = $region52
      $region51: #{tabcnn_forward.1} parent=11 // pred_region
        _
      $region52: #{tabcnn_forward.1} parent=11 // pred_fallthru
        _
    $region12: #{tabcnn_forward.1} parent=5 // pred_fallthru
      _
    %p324 = scmp.lt.s32.totalorder %s17, 2
    // Predicated region
    $region53: #{tabcnn_forward.1} parent=5 // pred_check
      %p325 = pneg %p324
    $region54: #{tabcnn_forward.1} parent=5 // pred_check_branch
      %327 = sbr.rel (%p325) target = $region56
    $region55: #{tabcnn_forward.1} parent=5 // pred_region
      // Predicated region
      $region57: #{tabcnn_forward.1} parent=55 // pred_check
        %p328 = pneg %p37
      $region58: #{tabcnn_forward.1} parent=55 // pred_check_branch
        %330 = sbr.rel (%p328) target = $region60
      $region59: #{tabcnn_forward.1} parent=55 // pred_region
        %p331 = scmp.lt.s32.totalorder %s17, 1
        %s332 = scalar_select %p331, %s17, 1
        %s333 = smul.addr %s332, 15
        %s334 = smul.addr %s333, 8
        %s335 = scalar_lea.vmem %s0, %s334
      $region60: #{tabcnn_forward.1} parent=55 // pred_fallthru
        _
    $region56: #{tabcnn_forward.1} parent=5 // pred_fallthru
      _
    %p336 = scmp.le.s32.totalorder 1, %s17
    %p337 = scmp.lt.s32.totalorder %s17, 3
    %p338 = pnand %p336, %p337
    %p339 = pneg %p338
    // Predicated region
    $region61: #{tabcnn_forward.1} parent=5 // pred_check
      _
    $region62: #{tabcnn_forward.1} parent=5 // pred_check_branch
      %341 = sbr.rel (%p338) target = $region64
    $region63: #{tabcnn_forward.1} parent=5 // pred_region
      %s342 = ssub.s32 %s17, 1
      %p343 = scmp.lt.s32.totalorder %s22, 1
      %s344 = scalar_select %p343, %s22, 1
      %s345 = smul.addr %s344, 15
      %s346 = smul.addr %s345, 8
      %s347 = scalar_lea.vmem %s0, %s346
      %p348 = pneg %p43
      %p349 = pneg %p40
      %p350 = pneg %p64
      %p351 = pneg %p61
      %p352 = pneg %p85
      %p353 = pneg %p82
      %p354 = pneg %p106
      %p355 = pneg %p103
      %p356 = pneg %p127
      %p357 = pneg %p124
      %p358 = pneg %p148
      %p359 = pneg %p145
      %p360 = pneg %p169
      %p361 = pneg %p166
      %p362 = pneg %p190
      %p363 = pneg %p187
      %p364 = pneg %p211
      %p365 = pneg %p208
      %p366 = pneg %p232
      %p367 = pneg %p229
      %p368 = pneg %p253
      %p369 = pneg %p250
      %p370 = pneg %p279
      %p371 = pneg %p276
      %p372 = scmp.lt.s32.totalorder %s22, 1
      %s373 = scalar_select %p372, %s22, 1
      %s374 = smul.addr %s373, 8
      %s375 = scalar_lea.vmem %s11, %s374
      %p376 = scmp.lt.s32.totalorder %s22, 1
      %s377 = scalar_select %p376, %s22, 1
      %s378 = smul.addr %s377, 15
      %s379 = smul.addr %s378, 8
      %s380 = scalar_lea.vmem %s0, %s379
      %p381 = scmp.lt.s32.totalorder %s22, 1
      %s382 = scalar_select %p381, %s22, 1
      %s383 = smul.addr %s382, 8
      %s384 = scalar_lea.vmem %s11, %s383
      %v385 = vld [vmem:[%s380] sm:$0xff]
      %v386 = vld [vmem:[%s380 + $0x8] sm:$0xff]
      %v387 = vld [vmem:[%s380 + $0x10] sm:$0xff]
      %v388 = vld [vmem:[%s380 + $0x18] sm:$0xff]
      %v389 = vld [vmem:[%s380 + $0x20] sm:$0xff]
      %v390 = vld [vmem:[%s380 + $0x28] sm:$0xff]
      %v391 = vld [vmem:[%s380 + $0x30] sm:$0xff]
      %v392 = vld [vmem:[%s380 + $0x38] sm:$0xff]
      %v393 = vld [vmem:[%s380 + $0x40] sm:$0xff]
      %v394 = vld [vmem:[%s380 + $0x48] sm:$0xff]
      %v395 = vld [vmem:[%s380 + $0x50] sm:$0xff]
      %v396 = vld [vmem:[%s380 + $0x58] sm:$0xff]
      %v397 = vld [vmem:[%s380 + $0x60] sm:$0xff]
      %v398 = vld [vmem:[%s380 + $0x68] sm:$0xff]
      %v399 = vld [vmem:[%s380 + $0x70] sm:$0xff]
      %v400 = vld [vmem:[%s1] sm:$0xff]
      %v401 = vld [vmem:[%s1 + $0x8] sm:$0xff]
      %v402 = vld [vmem:[%s2] sm:$0x1]
      %v404 = vlaneseq
      %v405 = vshrl.u32 %v404, 7
      %v406 = vsub.s32 0, %v405
      %v407 = vrot.slane %v402, %v406
      %vm409 = vcmask 130048
      %v411 = vsel %vm409, %v385, 0
      %v414 = vsel %vm409, %v386, 0
      %v417 = vsel %vm409, %v387, 0
      %v420 = vsel %vm409, %v388, 0
      %v423 = vsel %vm409, %v389, 0
      %v426 = vsel %vm409, %v390, 0
      %v429 = vsel %vm409, %v391, 0
      %v432 = vsel %vm409, %v392, 0
      %v435 = vsel %vm409, %v393, 0
      %v438 = vsel %vm409, %v394, 0
      %v441 = vsel %vm409, %v395, 0
      %v444 = vsel %vm409, %v396, 0
      %v447 = vsel %vm409, %v397, 0
      %v450 = vsel %vm409, %v398, 0
      %v453 = vsel %vm409, %v399, 0
      %455 = vmatprep.subr.mxu0 0.0
      %456 = vmatpush1.msra.mxu0 %v400
      %457 = vmatprep.subr.mxu0 0.0
      %458 = vmatpush1.msra.mxu0 %v401
      %459 = vmatprep.subr.mxu0 0.0
      %460 = vmatpush1.msra.mxu0 0.0
      %461 = vmatprep.subr.mxu0 0.0
      %462 = vmatpush1.msra.mxu0 0.0
      %463 = vmatprep.subr.mxu0 0.0
      %464 = vmatpush1.msra.mxu0 0.0
      %465 = vmatprep.subr.mxu0 0.0
      %466 = vmatpush1.msra.mxu0 0.0
      %467 = vmatprep.subr.mxu0 0.0
      %468 = vmatpush1.msra.mxu0 0.0
      %469 = vmatprep.subr.mxu0 0.0
      %470 = vmatpush1.msra.mxu0 0.0
      %471 = vmatprep.subr.mxu0 0.0
      %472 = vmatpush1.msra.mxu0 0.0
      %473 = vmatprep.subr.mxu0 0.0
      %474 = vmatpush1.msra.mxu0 0.0
      %475 = vmatprep.subr.mxu0 0.0
      %476 = vmatpush1.msra.mxu0 0.0
      %477 = vmatprep.subr.mxu0 0.0
      %478 = vmatpush1.msra.mxu0 0.0
      %479 = vmatprep.subr.mxu0 0.0
      %480 = vmatpush1.msra.mxu0 0.0
      %481 = vmatprep.subr.mxu0 0.0
      %482 = vmatpush1.msra.mxu0 0.0
      %483 = vmatprep.subr.mxu0 0.0
      %484 = vmatpush1.msra.mxu0 0.0
      %485 = vmatprep.subr.mxu0 0.0
      %486 = vmatpush1.msra.mxu0 0.0
      %487 = vmatprep.subr.mxu0 0.0
      %488 = vmatpush1.msra.mxu0 0.0
      %489 = vmatprep.subr.mxu0 0.0
      %490 = vmatpush1.msra.mxu0 0.0
      %491 = vmatprep.subr.mxu0 0.0
      %492 = vmatpush1.msra.mxu0 0.0
      %493 = vmatprep.subr.mxu0 0.0
      %494 = vmatpush1.msra.mxu0 0.0
      %495 = vmatprep.subr.mxu0 0.0
      %496 = vmatpush1.msra.mxu0 0.0
      %497 = vmatprep.subr.mxu0 0.0
      %498 = vmatpush1.msra.mxu0 0.0
      %499 = vmatprep.subr.mxu0 0.0
      %500 = vmatpush1.msra.mxu0 0.0
      %501 = vmatprep.subr.mxu0 0.0
      %502 = vmatpush1.msra.mxu0 0.0
      %503 = vmatprep.subr.mxu0 0.0
      %504 = vmatpush1.msra.mxu0 0.0
      %505 = vmatprep.subr.mxu0 0.0
      %506 = vmatpush1.msra.mxu0 0.0
      %507 = vmatprep.subr.mxu0 0.0
      %508 = vmatpush1.msra.mxu0 0.0
      %509 = vmatprep.subr.mxu0 0.0
      %510 = vmatpush1.msra.mxu0 0.0
      %511 = vmatprep.subr.mxu0 0.0
      %512 = vmatpush1.msra.mxu0 0.0
      %513 = vmatprep.subr.mxu0 0.0
      %514 = vmatpush1.msra.mxu0 0.0
      %515 = vmatprep.subr.mxu0 0.0
      %516 = vmatpush1.msra.mxu0 0.0
      %517 = vmatprep.subr.mxu0 0.0
      %518 = vmatpush1.msra.mxu0 0.0
      %519 = vmatprep.mubr.f32.mxu0 0.0
      %520 = vmatmul.mubr.f32.gmra.mrb[0].mxu0 %v411
      %v521 = vpop.f32.mrb[0].mxu0
      %v522 = vadd.f32 %v407, %v521
      %v523 = vpop.f32.mrb[0].mxu0
      %524 = vmatprep.mubr.f32.mxu0 0.0
      %525 = vmatmul.mubr.f32.gmra.mrb[0].mxu0 %v414
      %v526 = vpop.f32.mrb[0].mxu0
      %v527 = vadd.f32 %v407, %v526
      %v528 = vpop.f32.mrb[0].mxu0
      %529 = vmatprep.mubr.f32.mxu0 0.0
      %530 = vmatmul.mubr.f32.gmra.mrb[0].mxu0 %v417
      %v531 = vpop.f32.mrb[0].mxu0
      %v532 = vadd.f32 %v407, %v531
      %v533 = vpop.f32.mrb[0].mxu0
      %534 = vmatprep.mubr.f32.mxu0 0.0
      %535 = vmatmul.mubr.f32.gmra.mrb[0].mxu0 %v420
      %v536 = vpop.f32.mrb[0].mxu0
      %v537 = vadd.f32 %v407, %v536
      %v538 = vpop.f32.mrb[0].mxu0
      %539 = vmatprep.mubr.f32.mxu0 0.0
      %540 = vmatmul.mubr.f32.gmra.mrb[0].mxu0 %v423
      %v541 = vpop.f32.mrb[0].mxu0
      %v542 = vadd.f32 %v407, %v541
      %v543 = vpop.f32.mrb[0].mxu0
      %544 = vmatprep.mubr.f32.mxu0 0.0
      %545 = vmatmul.mubr.f32.gmra.mrb[0].mxu0 %v426
      %v546 = vpop.f32.mrb[0].mxu0
      %v547 = vadd.f32 %v407, %v546
      %v548 = vpop.f32.mrb[0].mxu0
      %549 = vmatprep.mubr.f32.mxu0 0.0
      %550 = vmatmul.mubr.f32.gmra.mrb[0].mxu0 %v429
      %v551 = vpop.f32.mrb[0].mxu0
      %v552 = vadd.f32 %v407, %v551
      %v553 = vpop.f32.mrb[0].mxu0
      %554 = vmatprep.mubr.f32.mxu0 0.0
      %555 = vmatmul.mubr.f32.gmra.mrb[0].mxu0 %v432
      %v556 = vpop.f32.mrb[0].mxu0
      %v557 = vadd.f32 %v407, %v556
      %v558 = vpop.f32.mrb[0].mxu0
      %559 = vmatprep.mubr.f32.mxu0 0.0
      %560 = vmatmul.mubr.f32.gmra.mrb[0].mxu0 %v435
      %v561 = vpop.f32.mrb[0].mxu0
      %v562 = vadd.f32 %v407, %v561
      %v563 = vpop.f32.mrb[0].mxu0
      %564 = vmatprep.mubr.f32.mxu0 0.0
      %565 = vmatmul.mubr.f32.gmra.mrb[0].mxu0 %v438
      %v566 = vpop.f32.mrb[0].mxu0
      %v567 = vadd.f32 %v407, %v566
      %v568 = vpop.f32.mrb[0].mxu0
      %569 = vmatprep.mubr.f32.mxu0 0.0
      %570 = vmatmul.mubr.f32.gmra.mrb[0].mxu0 %v441
      %v571 = vpop.f32.mrb[0].mxu0
      %v572 = vadd.f32 %v407, %v571
      %v573 = vpop.f32.mrb[0].mxu0
      %574 = vmatprep.mubr.f32.mxu0 0.0
      %575 = vmatmul.mubr.f32.gmra.mrb[0].mxu0 %v444
      %v576 = vpop.f32.mrb[0].mxu0
      %v577 = vadd.f32 %v407, %v576
      %v578 = vpop.f32.mrb[0].mxu0
      %579 = vmatprep.mubr.f32.mxu0 0.0
      %580 = vmatmul.mubr.f32.gmra.mrb[0].mxu0 %v447
      %v581 = vpop.f32.mrb[0].mxu0
      %v582 = vadd.f32 %v407, %v581
      %v583 = vpop.f32.mrb[0].mxu0
      %584 = vmatprep.mubr.f32.mxu0 0.0
      %585 = vmatmul.mubr.f32.gmra.mrb[0].mxu0 %v450
      %v586 = vpop.f32.mrb[0].mxu0
      %v587 = vadd.f32 %v407, %v586
      %v588 = vpop.f32.mrb[0].mxu0
      %589 = vmatprep.mubr.f32.mxu0 0.0
      %590 = vmatmul.mubr.f32.gmra.mrb[0].mxu0 %v453
      %v591 = vpop.f32.mrb[0].mxu0
      %v592 = vadd.f32 %v407, %v591
      %v593 = vpop.f32.mrb[0].mxu0
      %594 = vdwg.mxu0
      %v595 = vmax.f32 %v522, 0.0
      %v596 = vmax.f32 %v527, 0.0
      %v597 = vmax.f32 %v532, 0.0
      %v598 = vmax.f32 %v537, 0.0
      %v599 = vmax.f32 %v542, 0.0
      %v600 = vmax.f32 %v547, 0.0
      %v601 = vmax.f32 %v552, 0.0
      %v602 = vmax.f32 %v557, 0.0
      %v603 = vmax.f32 %v562, 0.0
      %v604 = vmax.f32 %v567, 0.0
      %v605 = vmax.f32 %v572, 0.0
      %v606 = vmax.f32 %v577, 0.0
      %v607 = vmax.f32 %v582, 0.0
      %v608 = vmax.f32 %v587, 0.0
      %v609 = vmax.f32 %v592, 0.0
      %vm621 = vcmask 1046528
      %v622 = vrot.slane %v595, 1
      %v623 = vrot.slane %v596, 1
      %v624 = vsel %vm621, %v622, %v623
      %v625 = vrot.slane %v597, 1
      %v626 = vsel %vm621, %v623, %v625
      %v627 = vrot.slane %v598, 1
      %v628 = vsel %vm621, %v625, %v627
      %v629 = vrot.slane %v599, 1
      %v630 = vsel %vm621, %v627, %v629
      %v631 = vrot.slane %v600, 1
      %v632 = vsel %vm621, %v629, %v631
      %v633 = vrot.slane %v601, 1
      %v634 = vsel %vm621, %v631, %v633
      %v635 = vrot.slane %v602, 1
      %v636 = vsel %vm621, %v633, %v635
      %v637 = vrot.slane %v603, 1
      %v638 = vsel %vm621, %v635, %v637
      %v639 = vrot.slane %v604, 1
      %v640 = vsel %vm621, %v637, %v639
      %v641 = vrot.slane %v605, 1
      %v642 = vsel %vm621, %v639, %v641
      %643 = vrot.lane.b32.xlu0 %v624, 32
      %v644 = vpop.permute.xlu0 %643
      %645 = vrot.lane.b32.xlu0 %v626, 32
      %v646 = vpop.permute.xlu0 %645
      %647 = vrot.lane.b32.xlu0 %v628, 32
      %v648 = vpop.permute.xlu0 %647
      %649 = vrot.lane.b32.xlu0 %v630, 32
      %v650 = vpop.permute.xlu0 %649
      %651 = vrot.lane.b32.xlu0 %v632, 32
      %v652 = vpop.permute.xlu0 %651
      %653 = vrot.lane.b32.xlu0 %v634, 32
      %v654 = vpop.permute.xlu0 %653
      %655 = vrot.lane.b32.xlu0 %v636, 32
      %v656 = vpop.permute.xlu0 %655
      %657 = vrot.lane.b32.xlu0 %v638, 32
      %v658 = vpop.permute.xlu0 %657
      %659 = vrot.lane.b32.xlu0 %v640, 32
      %v660 = vpop.permute.xlu0 %659
      %661 = vrot.lane.b32.xlu0 %v642, 32
      %v662 = vpop.permute.xlu0 %661
      %vm673 = vcmask 1045504
      %v674 = vrot.slane %v595, 2
      %v675 = vrot.slane %v596, 2
      %v676 = vsel %vm673, %v674, %v675
      %v677 = vrot.slane %v597, 2
      %v678 = vsel %vm673, %v675, %v677
      %v679 = vrot.slane %v598, 2
      %v680 = vsel %vm673, %v677, %v679
      %v681 = vrot.slane %v599, 2
      %v682 = vsel %vm673, %v679, %v681
      %v683 = vrot.slane %v600, 2
      %v684 = vsel %vm673, %v681, %v683
      %v685 = vrot.slane %v601, 2
      %v686 = vsel %vm673, %v683, %v685
      %v687 = vrot.slane %v602, 2
      %v688 = vsel %vm673, %v685, %v687
      %v689 = vrot.slane %v603, 2
      %v690 = vsel %vm673, %v687, %v689
      %v691 = vrot.slane %v604, 2
      %v692 = vsel %vm673, %v689, %v691
      %v693 = vrot.slane %v605, 2
      %v694 = vsel %vm673, %v691, %v693
      %695 = vrot.lane.b32.xlu0 %v676, 64
      %v696 = vpop.permute.xlu0 %695
      %697 = vrot.lane.b32.xlu0 %v678, 64
      %v698 = vpop.permute.xlu0 %697
      %699 = vrot.lane.b32.xlu0 %v680, 64
      %v700 = vpop.permute.xlu0 %699
      %701 = vrot.lane.b32.xlu0 %v682, 64
      %v702 = vpop.permute.xlu0 %701
      %703 = vrot.lane.b32.xlu0 %v684, 64
      %v704 = vpop.permute.xlu0 %703
      %705 = vrot.lane.b32.xlu0 %v686, 64
      %v706 = vpop.permute.xlu0 %705
      %707 = vrot.lane.b32.xlu0 %v688, 64
      %v708 = vpop.permute.xlu0 %707
      %709 = vrot.lane.b32.xlu0 %v690, 64
      %v710 = vpop.permute.xlu0 %709
      %711 = vrot.lane.b32.xlu0 %v692, 64
      %v712 = vpop.permute.xlu0 %711
      %713 = vrot.lane.b32.xlu0 %v694, 64
      %v714 = vpop.permute.xlu0 %713
      %726 = vrot.lane.b32.xlu0 %v597, 96
      %v727 = vpop.permute.xlu0 %726
      %728 = vrot.lane.b32.xlu0 %v598, 96
      %v729 = vpop.permute.xlu0 %728
      %730 = vrot.lane.b32.xlu0 %v599, 96
      %v731 = vpop.permute.xlu0 %730
      %732 = vrot.lane.b32.xlu0 %v600, 96
      %v733 = vpop.permute.xlu0 %732
      %734 = vrot.lane.b32.xlu0 %v601, 96
      %v735 = vpop.permute.xlu0 %734
      %736 = vrot.lane.b32.xlu0 %v602, 96
      %v737 = vpop.permute.xlu0 %736
      %738 = vrot.lane.b32.xlu0 %v603, 96
      %v739 = vpop.permute.xlu0 %738
      %740 = vrot.lane.b32.xlu0 %v604, 96
      %v741 = vpop.permute.xlu0 %740
      %742 = vrot.lane.b32.xlu0 %v605, 96
      %v743 = vpop.permute.xlu0 %742
      %744 = vrot.lane.b32.xlu0 %v606, 96
      %v745 = vpop.permute.xlu0 %744
      %v757 = vrot.slane %v606, 1
      %v758 = vsel %vm621, %v641, %v757
      %v759 = vrot.slane %v607, 1
      %v760 = vsel %vm621, %v757, %v759
      %v771 = vrot.slane %v606, 2
      %v772 = vsel %vm673, %v693, %v771
      %v773 = vrot.slane %v607, 2
      %v774 = vsel %vm673, %v771, %v773
      %775 = vrot.lane.b32.xlu0 %v680, 32
      %v776 = vpop.permute.xlu0 %775
      %777 = vrot.lane.b32.xlu0 %v682, 32
      %v778 = vpop.permute.xlu0 %777
      %779 = vrot.lane.b32.xlu0 %v684, 32
      %v780 = vpop.permute.xlu0 %779
      %781 = vrot.lane.b32.xlu0 %v686, 32
      %v782 = vpop.permute.xlu0 %781
      %783 = vrot.lane.b32.xlu0 %v688, 32
      %v784 = vpop.permute.xlu0 %783
      %785 = vrot.lane.b32.xlu0 %v690, 32
      %v786 = vpop.permute.xlu0 %785
      %787 = vrot.lane.b32.xlu0 %v692, 32
      %v788 = vpop.permute.xlu0 %787
      %789 = vrot.lane.b32.xlu0 %v694, 32
      %v790 = vpop.permute.xlu0 %789
      %791 = vrot.lane.b32.xlu0 %v772, 32
      %v792 = vpop.permute.xlu0 %791
      %793 = vrot.lane.b32.xlu0 %v774, 32
      %v794 = vpop.permute.xlu0 %793
      %806 = vrot.lane.b32.xlu0 %v599, 64
      %v807 = vpop.permute.xlu0 %806
      %808 = vrot.lane.b32.xlu0 %v600, 64
      %v809 = vpop.permute.xlu0 %808
      %810 = vrot.lane.b32.xlu0 %v601, 64
      %v811 = vpop.permute.xlu0 %810
      %812 = vrot.lane.b32.xlu0 %v602, 64
      %v813 = vpop.permute.xlu0 %812
      %814 = vrot.lane.b32.xlu0 %v603, 64
      %v815 = vpop.permute.xlu0 %814
      %816 = vrot.lane.b32.xlu0 %v604, 64
      %v817 = vpop.permute.xlu0 %816
      %818 = vrot.lane.b32.xlu0 %v605, 64
      %v819 = vpop.permute.xlu0 %818
      %820 = vrot.lane.b32.xlu0 %v606, 64
      %v821 = vpop.permute.xlu0 %820
      %822 = vrot.lane.b32.xlu0 %v607, 64
      %v823 = vpop.permute.xlu0 %822
      %824 = vrot.lane.b32.xlu0 %v608, 64
      %v825 = vpop.permute.xlu0 %824
      %v837 = vrot.slane %v608, 1
      %v838 = vsel %vm621, %v759, %v837
      %v839 = vrot.slane %v609, 1
      %v840 = vsel %vm621, %v837, %v839
      %841 = vrot.lane.b32.xlu0 %v632, 96
      %v842 = vpop.permute.xlu0 %841
      %843 = vrot.lane.b32.xlu0 %v634, 96
      %v844 = vpop.permute.xlu0 %843
      %845 = vrot.lane.b32.xlu0 %v636, 96
      %v846 = vpop.permute.xlu0 %845
      %847 = vrot.lane.b32.xlu0 %v638, 96
      %v848 = vpop.permute.xlu0 %847
      %849 = vrot.lane.b32.xlu0 %v640, 96
      %v850 = vpop.permute.xlu0 %849
      %851 = vrot.lane.b32.xlu0 %v642, 96
      %v852 = vpop.permute.xlu0 %851
      %853 = vrot.lane.b32.xlu0 %v758, 96
      %v854 = vpop.permute.xlu0 %853
      %855 = vrot.lane.b32.xlu0 %v760, 96
      %v856 = vpop.permute.xlu0 %855
      %857 = vrot.lane.b32.xlu0 %v838, 96
      %v858 = vpop.permute.xlu0 %857
      %859 = vrot.lane.b32.xlu0 %v840, 96
      %v860 = vpop.permute.xlu0 %859
      %v871 = vrot.slane %v608, 2
      %v872 = vsel %vm673, %v773, %v871
      %v873 = vrot.slane %v609, 2
      %v874 = vsel %vm673, %v871, %v873
      %vm875 = vcmask 261120
      %v876 = vsel %vm875, %v595, %v644
      %v877 = vsel %vm875, %v596, %v646
      %v878 = vsel %vm875, %v597, %v648
      %v879 = vsel %vm875, %v598, %v650
      %v880 = vsel %vm875, %v599, %v652
      %v881 = vsel %vm875, %v600, %v654
      %v882 = vsel %vm875, %v601, %v656
      %v883 = vsel %vm875, %v602, %v658
      %v884 = vsel %vm875, %v603, %v660
      %v885 = vsel %vm875, %v604, %v662
      %vm886 = vcmask 523264
      %v887 = vsel %vm886, %v876, %v696
      %v888 = vsel %vm886, %v877, %v698
      %v889 = vsel %vm886, %v878, %v700
      %v890 = vsel %vm886, %v879, %v702
      %v891 = vsel %vm886, %v880, %v704
      %v892 = vsel %vm886, %v881, %v706
      %v893 = vsel %vm886, %v882, %v708
      %v894 = vsel %vm886, %v883, %v710
      %v895 = vsel %vm886, %v884, %v712
      %v896 = vsel %vm886, %v885, %v714
      %vm897 = vcmask 785408
      %v898 = vsel %vm897, %v887, %v727
      %v899 = vsel %vm897, %v888, %v729
      %v900 = vsel %vm897, %v889, %v731
      %v901 = vsel %vm897, %v890, %v733
      %v902 = vsel %vm897, %v891, %v735
      %v903 = vsel %vm897, %v892, %v737
      %v904 = vsel %vm897, %v893, %v739
      %v905 = vsel %vm897, %v894, %v741
      %v906 = vsel %vm897, %v895, %v743
      %v907 = vsel %vm897, %v896, %v745
      %v908 = vsel %vm875, %v628, %v776
      %v909 = vsel %vm875, %v630, %v778
      %v910 = vsel %vm875, %v632, %v780
      %v911 = vsel %vm875, %v634, %v782
      %v912 = vsel %vm875, %v636, %v784
      %v913 = vsel %vm875, %v638, %v786
      %v914 = vsel %vm875, %v640, %v788
      %v915 = vsel %vm875, %v642, %v790
      %v916 = vsel %vm875, %v758, %v792
      %v917 = vsel %vm875, %v760, %v794
      %v918 = vsel %vm886, %v908, %v807
      %v919 = vsel %vm886, %v909, %v809
      %v920 = vsel %vm886, %v910, %v811
      %v921 = vsel %vm886, %v911, %v813
      %v922 = vsel %vm886, %v912, %v815
      %v923 = vsel %vm886, %v913, %v817
      %v924 = vsel %vm886, %v914, %v819
      %v925 = vsel %vm886, %v915, %v821
      %v926 = vsel %vm886, %v916, %v823
      %v927 = vsel %vm886, %v917, %v825
      %v928 = vsel %vm897, %v918, %v842
      %v929 = vsel %vm897, %v919, %v844
      %v930 = vsel %vm897, %v920, %v846
      %v931 = vsel %vm897, %v921, %v848
      %v932 = vsel %vm897, %v922, %v850
      %v933 = vsel %vm897, %v923, %v852
      %v934 = vsel %vm897, %v924, %v854
      %v935 = vsel %vm897, %v925, %v856
      %v936 = vsel %vm897, %v926, %v858
      %v937 = vsel %vm897, %v927, %v860
      %v938 = vld [vmem:[%s3] sm:$0xff]
      %v939 = vld [vmem:[%s3 + $0x8] sm:$0xff]
      %v940 = vld [vmem:[%s3 + $0x10] sm:$0xff]
      %v941 = vld [vmem:[%s3 + $0x18] sm:$0xff]
      %v942 = vld [vmem:[%s3 + $0x20] sm:$0xff]
      %v943 = vld [vmem:[%s3 + $0x28] sm:$0xff]
      %v944 = vld [vmem:[%s3 + $0x30] sm:$0xff]
      %v945 = vld [vmem:[%s3 + $0x38] sm:$0xff]
      %v946 = vld [vmem:[%s3 + $0x40] sm:$0xff]
      %v947 = vld [vmem:[%s3 + $0x48] sm:$0xff]
      %v948 = vld [vmem:[%s3 + $0x50] sm:$0xff]
      %v949 = vld [vmem:[%s3 + $0x58] sm:$0xff]
      %v950 = vld [vmem:[%s3 + $0x60] sm:$0xff]
      %v951 = vld [vmem:[%s3 + $0x68] sm:$0xff]
      %v952 = vld [vmem:[%s3 + $0x70] sm:$0xff]
      %v953 = vld [vmem:[%s3 + $0x78] sm:$0xff]
      %v954 = vld [vmem:[%s3 + $0x80] sm:$0xff]
      %v955 = vld [vmem:[%s3 + $0x88] sm:$0xff]
      %v956 = vld [vmem:[%s3 + $0x90] sm:$0xff]
      %v957 = vld [vmem:[%s3 + $0x98] sm:$0xff]
      %v958 = vld [vmem:[%s3 + $0xa0] sm:$0xff]
      %v959 = vld [vmem:[%s3 + $0xa8] sm:$0xff]
      %v960 = vld [vmem:[%s3 + $0xb0] sm:$0xff]
      %v961 = vld [vmem:[%s3 + $0xb8] sm:$0xff]
      %v962 = vld [vmem:[%s3 + $0xc0] sm:$0xff]
      %v963 = vld [vmem:[%s3 + $0xc8] sm:$0xff]
      %v964 = vld [vmem:[%s3 + $0xd0] sm:$0xff]
      %v965 = vld [vmem:[%s3 + $0xd8] sm:$0xff]
      %v966 = vld [vmem:[%s3 + $0xe0] sm:$0xff]
      %v967 = vld [vmem:[%s3 + $0xe8] sm:$0xff]
      %v968 = vld [vmem:[%s3 + $0xf0] sm:$0xff]
      %v969 = vld [vmem:[%s3 + $0xf8] sm:$0xff]
      %v970 = vld [vmem:[%s3 + $0x100] sm:$0xff]
      %v971 = vld [vmem:[%s3 + $0x108] sm:$0xff]
      %v972 = vld [vmem:[%s3 + $0x110] sm:$0xff]
      %v973 = vld [vmem:[%s3 + $0x118] sm:$0xff]
      %v974 = vld [vmem:[%s4] sm:$0x1]
      %v976 = vlaneseq
      %v977 = vshrl.u32 %v976, 7
      %v978 = vsub.s32 0, %v977
      %v979 = vrot.slane %v974, %v978
      %v981 = vsel %vm875, %v684, 0
      %v983 = vsel %vm875, %v686, 0
      %v985 = vsel %vm875, %v688, 0
      %v987 = vsel %vm875, %v690, 0
      %v989 = vsel %vm875, %v692, 0
      %v991 = vsel %vm875, %v694, 0
      %v993 = vsel %vm875, %v772, 0
      %v995 = vsel %vm875, %v774, 0
      %v997 = vsel %vm875, %v872, 0
      %v999 = vsel %vm875, %v874, 0
      %1001 = vmatprep.subr.mxu0 0.0
      %1002 = vmatpush1.msra.mxu0 %v938
      %1003 = vmatprep.subr.mxu0 0.0
      %1004 = vmatpush1.msra.mxu0 %v939
      %1005 = vmatprep.subr.mxu0 0.0
      %1006 = vmatpush1.msra.mxu0 %v940
      %1007 = vmatprep.subr.mxu0 0.0
      %1008 = vmatpush1.msra.mxu0 %v941
      %1009 = vmatprep.subr.mxu0 0.0
      %1010 = vmatpush1.msra.mxu0 %v942
      %1011 = vmatprep.subr.mxu0 0.0
      %1012 = vmatpush1.msra.mxu0 %v943
      %1013 = vmatprep.subr.mxu0 0.0
      %1014 = vmatpush1.msra.mxu0 %v944
      %1015 = vmatprep.subr.mxu0 0.0
      %1016 = vmatpush1.msra.mxu0 %v945
      %1017 = vmatprep.subr.mxu0 0.0
      %1018 = vmatpush1.msra.mxu0 %v946
      %1019 = vmatprep.subr.mxu0 0.0
      %1020 = vmatpush1.msra.mxu0 %v947
      %1021 = vmatprep.subr.mxu0 0.0
      %1022 = vmatpush1.msra.mxu0 %v948
      %1023 = vmatprep.subr.mxu0 0.0
      %1024 = vmatpush1.msra.mxu0 %v949
      %1025 = vmatprep.subr.mxu0 0.0
      %1026 = vmatpush1.msra.mxu0 %v950
      %1027 = vmatprep.subr.mxu0 0.0
      %1028 = vmatpush1.msra.mxu0 %v951
      %1029 = vmatprep.subr.mxu0 0.0
      %1030 = vmatpush1.msra.mxu0 %v952
      %1031 = vmatprep.subr.mxu0 0.0
      %1032 = vmatpush1.msra.mxu0 %v953
      %1033 = vmatprep.subr.mxu0 0.0
      %1034 = vmatpush1.msra.mxu0 %v954
      %1035 = vmatprep.subr.mxu0 0.0
      %1036 = vmatpush1.msra.mxu0 %v955
      %1037 = vmatprep.subr.mxu0 0.0
      %1038 = vmatpush1.msra.mxu0 %v956
      %1039 = vmatprep.subr.mxu0 0.0
      %1040 = vmatpush1.msra.mxu0 %v957
      %1041 = vmatprep.subr.mxu0 0.0
      %1042 = vmatpush1.msra.mxu0 %v958
      %1043 = vmatprep.subr.mxu0 0.0
      %1044 = vmatpush1.msra.mxu0 %v959
      %1045 = vmatprep.subr.mxu0 0.0
      %1046 = vmatpush1.msra.mxu0 %v960
      %1047 = vmatprep.subr.mxu0 0.0
      %1048 = vmatpush1.msra.mxu0 %v961
      %1049 = vmatprep.subr.mxu0 0.0
      %1050 = vmatpush1.msra.mxu0 %v962
      %1051 = vmatprep.subr.mxu0 0.0
      %1052 = vmatpush1.msra.mxu0 %v963
      %1053 = vmatprep.subr.mxu0 0.0
      %1054 = vmatpush1.msra.mxu0 %v964
      %1055 = vmatprep.subr.mxu0 0.0
      %1056 = vmatpush1.msra.mxu0 %v965
      %1057 = vmatprep.subr.mxu0 0.0
      %1058 = vmatpush1.msra.mxu0 %v966
      %1059 = vmatprep.subr.mxu0 0.0
      %1060 = vmatpush1.msra.mxu0 %v967
      %1061 = vmatprep.subr.mxu0 0.0
      %1062 = vmatpush1.msra.mxu0 %v968
      %1063 = vmatprep.subr.mxu0 0.0
      %1064 = vmatpush1.msra.mxu0 %v969
      %1065 = vmatprep.mubr.f32.mxu0 %v928
      %1066 = vmatmul.mubr.f32.gmra.mrb[0].mxu0 %v898
      %v1067 = vpop.f32.mrb[0].mxu0
      %v1068 = vadd.f32 %v979, %v1067
      %v1069 = vpop.f32.mrb[0].mxu0
      %1070 = vmatprep.mubr.f32.mxu0 %v929
      %1071 = vmatmul.mubr.f32.gmra.mrb[0].mxu0 %v899
      %v1072 = vpop.f32.mrb[0].mxu0
      %v1073 = vadd.f32 %v979, %v1072
      %v1074 = vpop.f32.mrb[0].mxu0
      %1075 = vmatprep.mubr.f32.mxu0 %v930
      %1076 = vmatmul.mubr.f32.gmra.mrb[0].mxu0 %v900
      %v1077 = vpop.f32.mrb[0].mxu0
      %v1078 = vadd.f32 %v979, %v1077
      %v1079 = vpop.f32.mrb[0].mxu0
      %1080 = vmatprep.mubr.f32.mxu0 %v931
      %1081 = vmatmul.mubr.f32.gmra.mrb[0].mxu0 %v901
      %v1082 = vpop.f32.mrb[0].mxu0
      %v1083 = vadd.f32 %v979, %v1082
      %v1084 = vpop.f32.mrb[0].mxu0
      %1085 = vmatprep.mubr.f32.mxu0 %v932
      %1086 = vmatmul.mubr.f32.gmra.mrb[0].mxu0 %v902
      %v1087 = vpop.f32.mrb[0].mxu0
      %v1088 = vadd.f32 %v979, %v1087
      %v1089 = vpop.f32.mrb[0].mxu0
      %1090 = vmatprep.mubr.f32.mxu0 %v933
      %1091 = vmatmul.mubr.f32.gmra.mrb[0].mxu0 %v903
      %v1092 = vpop.f32.mrb[0].mxu0
      %v1093 = vadd.f32 %v979, %v1092
      %v1094 = vpop.f32.mrb[0].mxu0
      %1095 = vmatprep.mubr.f32.mxu0 %v934
      %1096 = vmatmul.mubr.f32.gmra.mrb[0].mxu0 %v904
      %v1097 = vpop.f32.mrb[0].mxu0
      %v1098 = vadd.f32 %v979, %v1097
      %v1099 = vpop.f32.mrb[0].mxu0
      %1100 = vmatprep.mubr.f32.mxu0 %v935
      %1101 = vmatmul.mubr.f32.gmra.mrb[0].mxu0 %v905
      %v1102 = vpop.f32.mrb[0].mxu0
      %v1103 = vadd.f32 %v979, %v1102
      %v1104 = vpop.f32.mrb[0].mxu0
      %1105 = vmatprep.mubr.f32.mxu0 %v936
      %1106 = vmatmul.mubr.f32.gmra.mrb[0].mxu0 %v906
      %v1107 = vpop.f32.mrb[0].mxu0
      %v1108 = vadd.f32 %v979, %v1107
      %v1109 = vpop.f32.mrb[0].mxu0
      %1110 = vmatprep.mubr.f32.mxu0 %v937
      %1111 = vmatmul.mubr.f32.gmra.mrb[0].mxu0 %v907
      %v1112 = vpop.f32.mrb[0].mxu0
      %v1113 = vadd.f32 %v979, %v1112
      %v1114 = vpop.f32.mrb[0].mxu0
      %1115 = vdwg.mxu0
      %1116 = vmatprep.subr.mxu0 0.0
      %1117 = vmatpush1.msra.mxu0 %v970
      %1118 = vmatprep.subr.mxu0 0.0
      %1119 = vmatpush1.msra.mxu0 %v971
      %1120 = vmatprep.subr.mxu0 0.0
      %1121 = vmatpush1.msra.mxu0 %v972
      %1122 = vmatprep.subr.mxu0 0.0
      %1123 = vmatpush1.msra.mxu0 %v973
      %1124 = vmatprep.subr.mxu0 0.0
      %1125 = vmatpush1.msra.mxu0 0.0
      %1126 = vmatprep.subr.mxu0 0.0
      %1127 = vmatpush1.msra.mxu0 0.0
      %1128 = vmatprep.subr.mxu0 0.0
      %1129 = vmatpush1.msra.mxu0 0.0
      %1130 = vmatprep.subr.mxu0 0.0
      %1131 = vmatpush1.msra.mxu0 0.0
      %1132 = vmatprep.subr.mxu0 0.0
      %1133 = vmatpush1.msra.mxu0 0.0
      %1134 = vmatprep.subr.mxu0 0.0
      %1135 = vmatpush1.msra.mxu0 0.0
      %1136 = vmatprep.subr.mxu0 0.0
      %1137 = vmatpush1.msra.mxu0 0.0
      %1138 = vmatprep.subr.mxu0 0.0
      %1139 = vmatpush1.msra.mxu0 0.0
      %1140 = vmatprep.subr.mxu0 0.0
      %1141 = vmatpush1.msra.mxu0 0.0
      %1142 = vmatprep.subr.mxu0 0.0
      %1143 = vmatpush1.msra.mxu0 0.0
      %1144 = vmatprep.subr.mxu0 0.0
      %1145 = vmatpush1.msra.mxu0 0.0
      %1146 = vmatprep.subr.mxu0 0.0
      %1147 = vmatpush1.msra.mxu0 0.0
      %1148 = vmatprep.subr.mxu0 0.0
      %1149 = vmatpush1.msra.mxu0 0.0
      %1150 = vmatprep.subr.mxu0 0.0
      %1151 = vmatpush1.msra.mxu0 0.0
      %1152 = vmatprep.subr.mxu0 0.0
      %1153 = vmatpush1.msra.mxu0 0.0
      %1154 = vmatprep.subr.mxu0 0.0
      %1155 = vmatpush1.msra.mxu0 0.0
      %1156 = vmatprep.subr.mxu0 0.0
      %1157 = vmatpush1.msra.mxu0 0.0
      %1158 = vmatprep.subr.mxu0 0.0
      %1159 = vmatpush1.msra.mxu0 0.0
      %1160 = vmatprep.subr.mxu0 0.0
      %1161 = vmatpush1.msra.mxu0 0.0
      %1162 = vmatprep.subr.mxu0 0.0
      %1163 = vmatpush1.msra.mxu0 0.0
      %1164 = vmatprep.subr.mxu0 0.0
      %1165 = vmatpush1.msra.mxu0 0.0
      %1166 = vmatprep.subr.mxu0 0.0
      %1167 = vmatpush1.msra.mxu0 0.0
      %1168 = vmatprep.subr.mxu0 0.0
      %1169 = vmatpush1.msra.mxu0 0.0
      %1170 = vmatprep.subr.mxu0 0.0
      %1171 = vmatpush1.msra.mxu0 0.0
      %1172 = vmatprep.subr.mxu0 0.0
      %1173 = vmatpush1.msra.mxu0 0.0
      %1174 = vmatprep.subr.mxu0 0.0
      %1175 = vmatpush1.msra.mxu0 0.0
      %1176 = vmatprep.subr.mxu0 0.0
      %1177 = vmatpush1.msra.mxu0 0.0
      %1178 = vmatprep.subr.mxu0 0.0
      %1179 = vmatpush1.msra.mxu0 0.0
      %1180 = vmatprep.mubr.f32.mxu0 0.0
      %1181 = vmatmul.mubr.f32.gmra.mrb[0].mxu0 %v981
      %v1182 = vpop.f32.mrb[0].mxu0
      %v1183 = vadd.f32 %v1068, %v1182
      %v1184 = vpop.f32.mrb[0].mxu0
      %1185 = vmatprep.mubr.f32.mxu0 0.0
      %1186 = vmatmul.mubr.f32.gmra.mrb[0].mxu0 %v983
      %v1187 = vpop.f32.mrb[0].mxu0
      %v1188 = vadd.f32 %v1073, %v1187
      %v1189 = vpop.f32.mrb[0].mxu0
      %1190 = vmatprep.mubr.f32.mxu0 0.0
      %1191 = vmatmul.mubr.f32.gmra.mrb[0].mxu0 %v985
      %v1192 = vpop.f32.mrb[0].mxu0
      %v1193 = vadd.f32 %v1078, %v1192
      %v1194 = vpop.f32.mrb[0].mxu0
      %1195 = vmatprep.mubr.f32.mxu0 0.0
      %1196 = vmatmul.mubr.f32.gmra.mrb[0].mxu0 %v987
      %v1197 = vpop.f32.mrb[0].mxu0
      %v1198 = vadd.f32 %v1083, %v1197
      %v1199 = vpop.f32.mrb[0].mxu0
      %1200 = vmatprep.mubr.f32.mxu0 0.0
      %1201 = vmatmul.mubr.f32.gmra.mrb[0].mxu0 %v989
      %v1202 = vpop.f32.mrb[0].mxu0
      %v1203 = vadd.f32 %v1088, %v1202
      %v1204 = vpop.f32.mrb[0].mxu0
      %1205 = vmatprep.mubr.f32.mxu0 0.0
      %1206 = vmatmul.mubr.f32.gmra.mrb[0].mxu0 %v991
      %v1207 = vpop.f32.mrb[0].mxu0
      %v1208 = vadd.f32 %v1093, %v1207
      %v1209 = vpop.f32.mrb[0].mxu0
      %1210 = vmatprep.mubr.f32.mxu0 0.0
      %1211 = vmatmul.mubr.f32.gmra.mrb[0].mxu0 %v993
      %v1212 = vpop.f32.mrb[0].mxu0
      %v1213 = vadd.f32 %v1098, %v1212
      %v1214 = vpop.f32.mrb[0].mxu0
      %1215 = vmatprep.mubr.f32.mxu0 0.0
      %1216 = vmatmul.mubr.f32.gmra.mrb[0].mxu0 %v995
      %v1217 = vpop.f32.mrb[0].mxu0
      %v1218 = vadd.f32 %v1103, %v1217
      %v1219 = vpop.f32.mrb[0].mxu0
      %1220 = vmatprep.mubr.f32.mxu0 0.0
      %1221 = vmatmul.mubr.f32.gmra.mrb[0].mxu0 %v997
      %v1222 = vpop.f32.mrb[0].mxu0
      %v1223 = vadd.f32 %v1108, %v1222
      %v1224 = vpop.f32.mrb[0].mxu0
      %1225 = vmatprep.mubr.f32.mxu0 0.0
      %1226 = vmatmul.mubr.f32.gmra.mrb[0].mxu0 %v999
      %v1227 = vpop.f32.mrb[0].mxu0
      %v1228 = vadd.f32 %v1113, %v1227
      %v1229 = vpop.f32.mrb[0].mxu0
      %1230 = vdwg.mxu0
      %v1231 = vmax.f32 %v1183, 0.0
      %v1232 = vmax.f32 %v1188, 0.0
      %v1233 = vmax.f32 %v1193, 0.0
      %v1234 = vmax.f32 %v1198, 0.0
      %v1235 = vmax.f32 %v1203, 0.0
      %v1236 = vmax.f32 %v1208, 0.0
      %v1237 = vmax.f32 %v1213, 0.0
      %v1238 = vmax.f32 %v1218, 0.0
      %v1239 = vmax.f32 %v1223, 0.0
      %v1240 = vmax.f32 %v1228, 0.0
      %v1247 = vrot.slane %v1231, 1
      %v1248 = vrot.slane %v1232, 1
      %v1249 = vsel %vm621, %v1247, %v1248
      %v1250 = vrot.slane %v1233, 1
      %v1251 = vsel %vm621, %v1248, %v1250
      %v1252 = vrot.slane %v1234, 1
      %v1253 = vsel %vm621, %v1250, %v1252
      %v1254 = vrot.slane %v1235, 1
      %v1255 = vsel %vm621, %v1252, %v1254
      %v1256 = vrot.slane %v1236, 1
      %v1257 = vsel %vm621, %v1254, %v1256
      %1258 = vrot.lane.b32.xlu0 %v1249, 64
      %v1259 = vpop.permute.xlu0 %1258
      %1260 = vrot.lane.b32.xlu0 %v1251, 64
      %v1261 = vpop.permute.xlu0 %1260
      %1262 = vrot.lane.b32.xlu0 %v1253, 64
      %v1263 = vpop.permute.xlu0 %1262
      %1264 = vrot.lane.b32.xlu0 %v1255, 64
      %v1265 = vpop.permute.xlu0 %1264
      %1266 = vrot.lane.b32.xlu0 %v1257, 64
      %v1267 = vpop.permute.xlu0 %1266
      %v1273 = vrot.slane %v1231, 2
      %v1274 = vrot.slane %v1232, 2
      %v1275 = vsel %vm673, %v1273, %v1274
      %v1276 = vrot.slane %v1233, 2
      %v1277 = vsel %vm673, %v1274, %v1276
      %v1278 = vrot.slane %v1234, 2
      %v1279 = vsel %vm673, %v1276, %v1278
      %v1280 = vrot.slane %v1235, 2
      %v1281 = vsel %vm673, %v1278, %v1280
      %v1282 = vrot.slane %v1236, 2
      %v1283 = vsel %vm673, %v1280, %v1282
      %1290 = vrot.lane.b32.xlu0 %v1233, 64
      %v1291 = vpop.permute.xlu0 %1290
      %1292 = vrot.lane.b32.xlu0 %v1234, 64
      %v1293 = vpop.permute.xlu0 %1292
      %1294 = vrot.lane.b32.xlu0 %v1235, 64
      %v1295 = vpop.permute.xlu0 %1294
      %1296 = vrot.lane.b32.xlu0 %v1236, 64
      %v1297 = vpop.permute.xlu0 %1296
      %1298 = vrot.lane.b32.xlu0 %v1237, 64
      %v1299 = vpop.permute.xlu0 %1298
      %v1306 = vrot.slane %v1237, 1
      %v1307 = vsel %vm621, %v1256, %v1306
      %v1308 = vrot.slane %v1238, 1
      %v1309 = vsel %vm621, %v1306, %v1308
      %v1315 = vrot.slane %v1237, 2
      %v1316 = vsel %vm673, %v1282, %v1315
      %v1317 = vrot.slane %v1238, 2
      %v1318 = vsel %vm673, %v1315, %v1317
      %1319 = vrot.lane.b32.xlu0 %v1279, 64
      %v1320 = vpop.permute.xlu0 %1319
      %1321 = vrot.lane.b32.xlu0 %v1281, 64
      %v1322 = vpop.permute.xlu0 %1321
      %1323 = vrot.lane.b32.xlu0 %v1283, 64
      %v1324 = vpop.permute.xlu0 %1323
      %1325 = vrot.lane.b32.xlu0 %v1316, 64
      %v1326 = vpop.permute.xlu0 %1325
      %1327 = vrot.lane.b32.xlu0 %v1318, 64
      %v1328 = vpop.permute.xlu0 %1327
      %v1336 = vrot.slane %v1239, 1
      %v1337 = vsel %vm621, %v1308, %v1336
      %v1338 = vrot.slane %v1240, 1
      %v1339 = vsel %vm621, %v1336, %v1338
      %1340 = vrot.lane.b32.xlu0 %v1307, 64
      %v1341 = vpop.permute.xlu0 %1340
      %1342 = vrot.lane.b32.xlu0 %v1309, 64
      %v1343 = vpop.permute.xlu0 %1342
      %1344 = vrot.lane.b32.xlu0 %v1337, 64
      %v1345 = vpop.permute.xlu0 %1344
      %1346 = vrot.lane.b32.xlu0 %v1339, 64
      %v1347 = vpop.permute.xlu0 %1346
      %v1352 = vrot.slane %v1239, 2
      %v1353 = vsel %vm673, %v1317, %v1352
      %v1354 = vrot.slane %v1240, 2
      %v1355 = vsel %vm673, %v1352, %v1354
      %v1356 = vsel %vm886, %v1231, %v1259
      %v1357 = vsel %vm886, %v1232, %v1261
      %v1358 = vsel %vm886, %v1233, %v1263
      %v1359 = vsel %vm886, %v1234, %v1265
      %v1360 = vsel %vm886, %v1235, %v1267
      %v1361 = vsel %vm886, %v1275, %v1291
      %v1362 = vsel %vm886, %v1277, %v1293
      %v1363 = vsel %vm886, %v1279, %v1295
      %v1364 = vsel %vm886, %v1281, %v1297
      %v1365 = vsel %vm886, %v1283, %v1299
      %v1366 = vsel %vm886, %v1253, %v1320
      %v1367 = vsel %vm886, %v1255, %v1322
      %v1368 = vsel %vm886, %v1257, %v1324
      %v1369 = vsel %vm886, %v1307, %v1326
      %v1370 = vsel %vm886, %v1309, %v1328
      %v1371 = vsel %vm886, %v1236, %v1341
      %v1372 = vsel %vm886, %v1237, %v1343
      %v1373 = vsel %vm886, %v1238, %v1345
      %v1374 = vsel %vm886, %v1239, %v1347
      %v1375 = vld [vmem:[%s5] sm:$0xff]
      %v1376 = vld [vmem:[%s5 + $0x8] sm:$0xff]
      %v1377 = vld [vmem:[%s5 + $0x10] sm:$0xff]
      %v1378 = vld [vmem:[%s5 + $0x18] sm:$0xff]
      %v1379 = vld [vmem:[%s5 + $0x20] sm:$0xff]
      %v1380 = vld [vmem:[%s5 + $0x28] sm:$0xff]
      %v1381 = vld [vmem:[%s5 + $0x30] sm:$0xff]
      %v1382 = vld [vmem:[%s5 + $0x38] sm:$0xff]
      %v1383 = vld [vmem:[%s5 + $0x40] sm:$0xff]
      %v1384 = vld [vmem:[%s5 + $0x48] sm:$0xff]
      %v1385 = vld [vmem:[%s5 + $0x50] sm:$0xff]
      %v1386 = vld [vmem:[%s5 + $0x58] sm:$0xff]
      %v1387 = vld [vmem:[%s5 + $0x60] sm:$0xff]
      %v1388 = vld [vmem:[%s5 + $0x68] sm:$0xff]
      %v1389 = vld [vmem:[%s5 + $0x70] sm:$0xff]
      %v1390 = vld [vmem:[%s5 + $0x78] sm:$0xff]
      %v1391 = vld [vmem:[%s5 + $0x80] sm:$0xff]
      %v1392 = vld [vmem:[%s5 + $0x88] sm:$0xff]
      %v1393 = vld [vmem:[%s5 + $0x90] sm:$0xff]
      %v1394 = vld [vmem:[%s5 + $0x98] sm:$0xff]
      %v1395 = vld [vmem:[%s5 + $0xa0] sm:$0xff]
      %v1396 = vld [vmem:[%s5 + $0xa8] sm:$0xff]
      %v1397 = vld [vmem:[%s5 + $0xb0] sm:$0xff]
      %v1398 = vld [vmem:[%s5 + $0xb8] sm:$0xff]
      %v1399 = vld [vmem:[%s5 + $0xc0] sm:$0xff]
      %v1400 = vld [vmem:[%s5 + $0xc8] sm:$0xff]
      %v1401 = vld [vmem:[%s5 + $0xd0] sm:$0xff]
      %v1402 = vld [vmem:[%s5 + $0xd8] sm:$0xff]
      %v1403 = vld [vmem:[%s5 + $0xe0] sm:$0xff]
      %v1404 = vld [vmem:[%s5 + $0xe8] sm:$0xff]
      %v1405 = vld [vmem:[%s5 + $0xf0] sm:$0xff]
      %v1406 = vld [vmem:[%s5 + $0xf8] sm:$0xff]
      %v1407 = vld [vmem:[%s5 + $0x100] sm:$0xff]
      %v1408 = vld [vmem:[%s5 + $0x108] sm:$0xff]
      %v1409 = vld [vmem:[%s5 + $0x110] sm:$0xff]
      %v1410 = vld [vmem:[%s5 + $0x118] sm:$0xff]
      %v1411 = vld [vmem:[%s5 + $0x120] sm:$0xff]
      %v1412 = vld [vmem:[%s5 + $0x128] sm:$0xff]
      %v1413 = vld [vmem:[%s5 + $0x130] sm:$0xff]
      %v1414 = vld [vmem:[%s5 + $0x138] sm:$0xff]
      %v1415 = vld [vmem:[%s5 + $0x140] sm:$0xff]
      %v1416 = vld [vmem:[%s5 + $0x148] sm:$0xff]
      %v1417 = vld [vmem:[%s5 + $0x150] sm:$0xff]
      %v1418 = vld [vmem:[%s5 + $0x158] sm:$0xff]
      %v1419 = vld [vmem:[%s5 + $0x160] sm:$0xff]
      %v1420 = vld [vmem:[%s5 + $0x168] sm:$0xff]
      %v1421 = vld [vmem:[%s5 + $0x170] sm:$0xff]
      %v1422 = vld [vmem:[%s5 + $0x178] sm:$0xff]
      %v1423 = vld [vmem:[%s5 + $0x180] sm:$0xff]
      %v1424 = vld [vmem:[%s5 + $0x188] sm:$0xff]
      %v1425 = vld [vmem:[%s5 + $0x190] sm:$0xff]
      %v1426 = vld [vmem:[%s5 + $0x198] sm:$0xff]
      %v1427 = vld [vmem:[%s5 + $0x1a0] sm:$0xff]
      %v1428 = vld [vmem:[%s5 + $0x1a8] sm:$0xff]
      %v1429 = vld [vmem:[%s5 + $0x1b0] sm:$0xff]
      %v1430 = vld [vmem:[%s5 + $0x1b8] sm:$0xff]
      %v1431 = vld [vmem:[%s5 + $0x1c0] sm:$0xff]
      %v1432 = vld [vmem:[%s5 + $0x1c8] sm:$0xff]
      %v1433 = vld [vmem:[%s5 + $0x1d0] sm:$0xff]
      %v1434 = vld [vmem:[%s5 + $0x1d8] sm:$0xff]
      %v1435 = vld [vmem:[%s5 + $0x1e0] sm:$0xff]
      %v1436 = vld [vmem:[%s5 + $0x1e8] sm:$0xff]
      %v1437 = vld [vmem:[%s5 + $0x1f0] sm:$0xff]
      %v1438 = vld [vmem:[%s5 + $0x1f8] sm:$0xff]
      %v1439 = vld [vmem:[%s5 + $0x200] sm:$0xff]
      %v1440 = vld [vmem:[%s5 + $0x208] sm:$0xff]
      %v1441 = vld [vmem:[%s5 + $0x210] sm:$0xff]
      %v1442 = vld [vmem:[%s5 + $0x218] sm:$0xff]
      %v1443 = vld [vmem:[%s5 + $0x220] sm:$0xff]
      %v1444 = vld [vmem:[%s5 + $0x228] sm:$0xff]
      %v1445 = vld [vmem:[%s5 + $0x230] sm:$0xff]
      %v1446 = vld [vmem:[%s5 + $0x238] sm:$0xff]
      %v1447 = vld [vmem:[%s6] sm:$0x1]
      %v1449 = vlaneseq
      %v1450 = vshrl.u32 %v1449, 7
      %v1451 = vsub.s32 0, %v1450
      %v1452 = vrot.slane %v1447, %v1451
      %v1454 = vsel %vm886, %v1283, 0
      %v1456 = vsel %vm886, %v1316, 0
      %v1458 = vsel %vm886, %v1318, 0
      %v1460 = vsel %vm886, %v1353, 0
      %v1462 = vsel %vm886, %v1355, 0
      %1464 = vmatprep.subr.mxu0 0.0
      %1465 = vmatpush1.msra.mxu0 %v1375
      %1466 = vmatprep.subr.mxu0 0.0
      %1467 = vmatpush1.msra.mxu0 %v1376
      %1468 = vmatprep.subr.mxu0 0.0
      %1469 = vmatpush1.msra.mxu0 %v1377
      %1470 = vmatprep.subr.mxu0 0.0
      %1471 = vmatpush1.msra.mxu0 %v1378
      %1472 = vmatprep.subr.mxu0 0.0
      %1473 = vmatpush1.msra.mxu0 %v1379
      %1474 = vmatprep.subr.mxu0 0.0
      %1475 = vmatpush1.msra.mxu0 %v1380
      %1476 = vmatprep.subr.mxu0 0.0
      %1477 = vmatpush1.msra.mxu0 %v1381
      %1478 = vmatprep.subr.mxu0 0.0
      %1479 = vmatpush1.msra.mxu0 %v1382
      %1480 = vmatprep.subr.mxu0 0.0
      %1481 = vmatpush1.msra.mxu0 %v1383
      %1482 = vmatprep.subr.mxu0 0.0
      %1483 = vmatpush1.msra.mxu0 %v1384
      %1484 = vmatprep.subr.mxu0 0.0
      %1485 = vmatpush1.msra.mxu0 %v1385
      %1486 = vmatprep.subr.mxu0 0.0
      %1487 = vmatpush1.msra.mxu0 %v1386
      %1488 = vmatprep.subr.mxu0 0.0
      %1489 = vmatpush1.msra.mxu0 %v1387
      %1490 = vmatprep.subr.mxu0 0.0
      %1491 = vmatpush1.msra.mxu0 %v1388
      %1492 = vmatprep.subr.mxu0 0.0
      %1493 = vmatpush1.msra.mxu0 %v1389
      %1494 = vmatprep.subr.mxu0 0.0
      %1495 = vmatpush1.msra.mxu0 %v1390
      %1496 = vmatprep.subr.mxu0 0.0
      %1497 = vmatpush1.msra.mxu0 %v1391
      %1498 = vmatprep.subr.mxu0 0.0
      %1499 = vmatpush1.msra.mxu0 %v1392
      %1500 = vmatprep.subr.mxu0 0.0
      %1501 = vmatpush1.msra.mxu0 %v1393
      %1502 = vmatprep.subr.mxu0 0.0
      %1503 = vmatpush1.msra.mxu0 %v1394
      %1504 = vmatprep.subr.mxu0 0.0
      %1505 = vmatpush1.msra.mxu0 %v1395
      %1506 = vmatprep.subr.mxu0 0.0
      %1507 = vmatpush1.msra.mxu0 %v1396
      %1508 = vmatprep.subr.mxu0 0.0
      %1509 = vmatpush1.msra.mxu0 %v1397
      %1510 = vmatprep.subr.mxu0 0.0
      %1511 = vmatpush1.msra.mxu0 %v1398
      %1512 = vmatprep.subr.mxu0 0.0
      %1513 = vmatpush1.msra.mxu0 %v1399
      %1514 = vmatprep.subr.mxu0 0.0
      %1515 = vmatpush1.msra.mxu0 %v1400
      %1516 = vmatprep.subr.mxu0 0.0
      %1517 = vmatpush1.msra.mxu0 %v1401
      %1518 = vmatprep.subr.mxu0 0.0
      %1519 = vmatpush1.msra.mxu0 %v1402
      %1520 = vmatprep.subr.mxu0 0.0
      %1521 = vmatpush1.msra.mxu0 %v1403
      %1522 = vmatprep.subr.mxu0 0.0
      %1523 = vmatpush1.msra.mxu0 %v1404
      %1524 = vmatprep.subr.mxu0 0.0
      %1525 = vmatpush1.msra.mxu0 %v1405
      %1526 = vmatprep.subr.mxu0 0.0
      %1527 = vmatpush1.msra.mxu0 %v1406
      %1528 = vmatprep.mubr.f32.mxu0 %v1361
      %1529 = vmatmul.mubr.f32.gmra.mrb[0].mxu0 %v1356
      %v1530 = vpop.f32.mrb[0].mxu0
      %v1531 = vadd.f32 %v1452, %v1530
      %v1532 = vpop.f32.mrb[0].mxu0
      %1533 = vmatprep.mubr.f32.mxu0 %v1362
      %1534 = vmatmul.mubr.f32.gmra.mrb[0].mxu0 %v1357
      %v1535 = vpop.f32.mrb[0].mxu0
      %v1536 = vadd.f32 %v1452, %v1535
      %v1537 = vpop.f32.mrb[0].mxu0
      %1538 = vmatprep.mubr.f32.mxu0 %v1363
      %1539 = vmatmul.mubr.f32.gmra.mrb[0].mxu0 %v1358
      %v1540 = vpop.f32.mrb[0].mxu0
      %v1541 = vadd.f32 %v1452, %v1540
      %v1542 = vpop.f32.mrb[0].mxu0
      %1543 = vmatprep.mubr.f32.mxu0 %v1364
      %1544 = vmatmul.mubr.f32.gmra.mrb[0].mxu0 %v1359
      %v1545 = vpop.f32.mrb[0].mxu0
      %v1546 = vadd.f32 %v1452, %v1545
      %v1547 = vpop.f32.mrb[0].mxu0
      %1548 = vmatprep.mubr.f32.mxu0 %v1365
      %1549 = vmatmul.mubr.f32.gmra.mrb[0].mxu0 %v1360
      %v1550 = vpop.f32.mrb[0].mxu0
      %v1551 = vadd.f32 %v1452, %v1550
      %v1552 = vpop.f32.mrb[0].mxu0
      %1553 = vdwg.mxu0
      %1554 = vmatprep.subr.mxu0 0.0
      %1555 = vmatpush1.msra.mxu0 %v1407
      %1556 = vmatprep.subr.mxu0 0.0
      %1557 = vmatpush1.msra.mxu0 %v1408
      %1558 = vmatprep.subr.mxu0 0.0
      %1559 = vmatpush1.msra.mxu0 %v1409
      %1560 = vmatprep.subr.mxu0 0.0
      %1561 = vmatpush1.msra.mxu0 %v1410
      %1562 = vmatprep.subr.mxu0 0.0
      %1563 = vmatpush1.msra.mxu0 %v1411
      %1564 = vmatprep.subr.mxu0 0.0
      %1565 = vmatpush1.msra.mxu0 %v1412
      %1566 = vmatprep.subr.mxu0 0.0
      %1567 = vmatpush1.msra.mxu0 %v1413
      %1568 = vmatprep.subr.mxu0 0.0
      %1569 = vmatpush1.msra.mxu0 %v1414
      %1570 = vmatprep.subr.mxu0 0.0
      %1571 = vmatpush1.msra.mxu0 %v1415
      %1572 = vmatprep.subr.mxu0 0.0
      %1573 = vmatpush1.msra.mxu0 %v1416
      %1574 = vmatprep.subr.mxu0 0.0
      %1575 = vmatpush1.msra.mxu0 %v1417
      %1576 = vmatprep.subr.mxu0 0.0
      %1577 = vmatpush1.msra.mxu0 %v1418
      %1578 = vmatprep.subr.mxu0 0.0
      %1579 = vmatpush1.msra.mxu0 %v1419
      %1580 = vmatprep.subr.mxu0 0.0
      %1581 = vmatpush1.msra.mxu0 %v1420
      %1582 = vmatprep.subr.mxu0 0.0
      %1583 = vmatpush1.msra.mxu0 %v1421
      %1584 = vmatprep.subr.mxu0 0.0
      %1585 = vmatpush1.msra.mxu0 %v1422
      %1586 = vmatprep.subr.mxu0 0.0
      %1587 = vmatpush1.msra.mxu0 %v1423
      %1588 = vmatprep.subr.mxu0 0.0
      %1589 = vmatpush1.msra.mxu0 %v1424
      %1590 = vmatprep.subr.mxu0 0.0
      %1591 = vmatpush1.msra.mxu0 %v1425
      %1592 = vmatprep.subr.mxu0 0.0
      %1593 = vmatpush1.msra.mxu0 %v1426
      %1594 = vmatprep.subr.mxu0 0.0
      %1595 = vmatpush1.msra.mxu0 %v1427
      %1596 = vmatprep.subr.mxu0 0.0
      %1597 = vmatpush1.msra.mxu0 %v1428
      %1598 = vmatprep.subr.mxu0 0.0
      %1599 = vmatpush1.msra.mxu0 %v1429
      %1600 = vmatprep.subr.mxu0 0.0
      %1601 = vmatpush1.msra.mxu0 %v1430
      %1602 = vmatprep.subr.mxu0 0.0
      %1603 = vmatpush1.msra.mxu0 %v1431
      %1604 = vmatprep.subr.mxu0 0.0
      %1605 = vmatpush1.msra.mxu0 %v1432
      %1606 = vmatprep.subr.mxu0 0.0
      %1607 = vmatpush1.msra.mxu0 %v1433
      %1608 = vmatprep.subr.mxu0 0.0
      %1609 = vmatpush1.msra.mxu0 %v1434
      %1610 = vmatprep.subr.mxu0 0.0
      %1611 = vmatpush1.msra.mxu0 %v1435
      %1612 = vmatprep.subr.mxu0 0.0
      %1613 = vmatpush1.msra.mxu0 %v1436
      %1614 = vmatprep.subr.mxu0 0.0
      %1615 = vmatpush1.msra.mxu0 %v1437
      %1616 = vmatprep.subr.mxu0 0.0
      %1617 = vmatpush1.msra.mxu0 %v1438
      %1618 = vmatprep.mubr.f32.mxu0 %v1360
      %1619 = vmatmul.mubr.f32.gmra.mrb[0].mxu0 %v1366
      %v1620 = vpop.f32.mrb[0].mxu0
      %v1621 = vadd.f32 %v1531, %v1620
      %v1622 = vpop.f32.mrb[0].mxu0
      %1623 = vmatprep.mubr.f32.mxu0 %v1371
      %1624 = vmatmul.mubr.f32.gmra.mrb[0].mxu0 %v1367
      %v1625 = vpop.f32.mrb[0].mxu0
      %v1626 = vadd.f32 %v1536, %v1625
      %v1627 = vpop.f32.mrb[0].mxu0
      %1628 = vmatprep.mubr.f32.mxu0 %v1372
      %1629 = vmatmul.mubr.f32.gmra.mrb[0].mxu0 %v1368
      %v1630 = vpop.f32.mrb[0].mxu0
      %v1631 = vadd.f32 %v1541, %v1630
      %v1632 = vpop.f32.mrb[0].mxu0
      %1633 = vmatprep.mubr.f32.mxu0 %v1373
      %1634 = vmatmul.mubr.f32.gmra.mrb[0].mxu0 %v1369
      %v1635 = vpop.f32.mrb[0].mxu0
      %v1636 = vadd.f32 %v1546, %v1635
      %v1637 = vpop.f32.mrb[0].mxu0
      %1638 = vmatprep.mubr.f32.mxu0 %v1374
      %1639 = vmatmul.mubr.f32.gmra.mrb[0].mxu0 %v1370
      %v1640 = vpop.f32.mrb[0].mxu0
      %v1641 = vadd.f32 %v1551, %v1640
      %v1642 = vpop.f32.mrb[0].mxu0
      %1643 = vdwg.mxu0
      %1644 = vmatprep.subr.mxu0 0.0
      %1645 = vmatpush1.msra.mxu0 %v1439
      %1646 = vmatprep.subr.mxu0 0.0
      %1647 = vmatpush1.msra.mxu0 %v1440
      %1648 = vmatprep.subr.mxu0 0.0
      %1649 = vmatpush1.msra.mxu0 %v1441
      %1650 = vmatprep.subr.mxu0 0.0
      %1651 = vmatpush1.msra.mxu0 %v1442
      %1652 = vmatprep.subr.mxu0 0.0
      %1653 = vmatpush1.msra.mxu0 %v1443
      %1654 = vmatprep.subr.mxu0 0.0
      %1655 = vmatpush1.msra.mxu0 %v1444
      %1656 = vmatprep.subr.mxu0 0.0
      %1657 = vmatpush1.msra.mxu0 %v1445
      %1658 = vmatprep.subr.mxu0 0.0
      %1659 = vmatpush1.msra.mxu0 %v1446
      %1660 = vmatprep.subr.mxu0 0.0
      %1661 = vmatpush1.msra.mxu0 0.0
      %1662 = vmatprep.subr.mxu0 0.0
      %1663 = vmatpush1.msra.mxu0 0.0
      %1664 = vmatprep.subr.mxu0 0.0
      %1665 = vmatpush1.msra.mxu0 0.0
      %1666 = vmatprep.subr.mxu0 0.0
      %1667 = vmatpush1.msra.mxu0 0.0
      %1668 = vmatprep.subr.mxu0 0.0
      %1669 = vmatpush1.msra.mxu0 0.0
      %1670 = vmatprep.subr.mxu0 0.0
      %1671 = vmatpush1.msra.mxu0 0.0
      %1672 = vmatprep.subr.mxu0 0.0
      %1673 = vmatpush1.msra.mxu0 0.0
      %1674 = vmatprep.subr.mxu0 0.0
      %1675 = vmatpush1.msra.mxu0 0.0
      %1676 = vmatprep.subr.mxu0 0.0
      %1677 = vmatpush1.msra.mxu0 0.0
      %1678 = vmatprep.subr.mxu0 0.0
      %1679 = vmatpush1.msra.mxu0 0.0
      %1680 = vmatprep.subr.mxu0 0.0
      %1681 = vmatpush1.msra.mxu0 0.0
      %1682 = vmatprep.subr.mxu0 0.0
      %1683 = vmatpush1.msra.mxu0 0.0
      %1684 = vmatprep.subr.mxu0 0.0
      %1685 = vmatpush1.msra.mxu0 0.0
      %1686 = vmatprep.subr.mxu0 0.0
      %1687 = vmatpush1.msra.mxu0 0.0
      %1688 = vmatprep.subr.mxu0 0.0
      %1689 = vmatpush1.msra.mxu0 0.0
      %1690 = vmatprep.subr.mxu0 0.0
      %1691 = vmatpush1.msra.mxu0 0.0
      %1692 = vmatprep.subr.mxu0 0.0
      %1693 = vmatpush1.msra.mxu0 0.0
      %1694 = vmatprep.subr.mxu0 0.0
      %1695 = vmatpush1.msra.mxu0 0.0
      %1696 = vmatprep.subr.mxu0 0.0
      %1697 = vmatpush1.msra.mxu0 0.0
      %1698 = vmatprep.subr.mxu0 0.0
      %1699 = vmatpush1.msra.mxu0 0.0
      %1700 = vmatprep.subr.mxu0 0.0
      %1701 = vmatpush1.msra.mxu0 0.0
      %1702 = vmatprep.subr.mxu0 0.0
      %1703 = vmatpush1.msra.mxu0 0.0
      %1704 = vmatprep.subr.mxu0 0.0
      %1705 = vmatpush1.msra.mxu0 0.0
      %1706 = vmatprep.subr.mxu0 0.0
      %1707 = vmatpush1.msra.mxu0 0.0
      %1708 = vmatprep.mubr.f32.mxu0 0.0
      %1709 = vmatmul.mubr.f32.gmra.mrb[0].mxu0 %v1454
      %v1710 = vpop.f32.mrb[0].mxu0
      %v1711 = vadd.f32 %v1621, %v1710
      %v1712 = vpop.f32.mrb[0].mxu0
      %1713 = vmatprep.mubr.f32.mxu0 0.0
      %1714 = vmatmul.mubr.f32.gmra.mrb[0].mxu0 %v1456
      %v1715 = vpop.f32.mrb[0].mxu0
      %v1716 = vadd.f32 %v1626, %v1715
      %v1717 = vpop.f32.mrb[0].mxu0
      %1718 = vmatprep.mubr.f32.mxu0 0.0
      %1719 = vmatmul.mubr.f32.gmra.mrb[0].mxu0 %v1458
      %v1720 = vpop.f32.mrb[0].mxu0
      %v1721 = vadd.f32 %v1631, %v1720
      %v1722 = vpop.f32.mrb[0].mxu0
      %1723 = vmatprep.mubr.f32.mxu0 0.0
      %1724 = vmatmul.mubr.f32.gmra.mrb[0].mxu0 %v1460
      %v1725 = vpop.f32.mrb[0].mxu0
      %v1726 = vadd.f32 %v1636, %v1725
      %v1727 = vpop.f32.mrb[0].mxu0
      %1728 = vmatprep.mubr.f32.mxu0 0.0
      %1729 = vmatmul.mubr.f32.gmra.mrb[0].mxu0 %v1462
      %v1730 = vpop.f32.mrb[0].mxu0
      %v1731 = vadd.f32 %v1641, %v1730
      %v1732 = vpop.f32.mrb[0].mxu0
      %1733 = vdwg.mxu0
      %v1734 = vmax.f32 %v1711, 0.0
      %v1735 = vmax.f32 %v1716, 0.0
      %v1736 = vmax.f32 %v1721, 0.0
      %v1737 = vmax.f32 %v1726, 0.0
      %v1738 = vmax.f32 %v1731, 0.0
      %v1739 = vmax.f32 %v1734, %v1736
      %v1740 = vmax.f32 %v1735, %v1737
      %v1741 = vmax.f32 %v1736, %v1738
      %v1745 = vrot.slane %v1739, 1
      %v1746 = vrot.slane %v1740, 1
      %v1747 = vsel %vm621, %v1745, %v1746
      %v1748 = vrot.slane %v1741, 1
      %v1749 = vsel %vm621, %v1746, %v1748
      %v1752 = vmax.f32 %v1739, %v1747
      %v1753 = vmax.f32 %v1740, %v1749
      %v1755 = vrot.slane %v1752, 2
      %1756 = vrot.lane.b32.xlu0 %v1755, 64
      %v1757 = vpop.permute.xlu0 %1756
      %v1759 = vrot.slane %v1752, 4
      %v1761 = vrot.slane %v1752, 6
      %1762 = vrot.lane.b32.xlu0 %v1761, 64
      %v1763 = vpop.permute.xlu0 %1762
      %v1765 = vsel %vm886, %v1752, %v1757
      %v1766 = vsel %vm886, %v1759, %v1763
      %v1767 = vld [vmem:[%s7] sm:$0xff]
      %v1768 = vld [vmem:[%s7 + $0x8] sm:$0xff]
      %v1769 = vld [vmem:[%s7 + $0x10] sm:$0xff]
      %v1770 = vld [vmem:[%s7 + $0x18] sm:$0xff]
      %v1771 = vld [vmem:[%s7 + $0x20] sm:$0xff]
      %v1772 = vld [vmem:[%s7 + $0x28] sm:$0xff]
      %v1773 = vld [vmem:[%s7 + $0x30] sm:$0xff]
      %v1774 = vld [vmem:[%s7 + $0x38] sm:$0xff]
      %v1775 = vld [vmem:[%s7 + $0x40] sm:$0xff]
      %v1776 = vld [vmem:[%s7 + $0x48] sm:$0xff]
      %v1777 = vld [vmem:[%s7 + $0x50] sm:$0xff]
      %v1778 = vld [vmem:[%s7 + $0x58] sm:$0xff]
      %v1779 = vld [vmem:[%s7 + $0x60] sm:$0xff]
      %v1780 = vld [vmem:[%s7 + $0x68] sm:$0xff]
      %v1781 = vld [vmem:[%s7 + $0x70] sm:$0xff]
      %v1782 = vld [vmem:[%s7 + $0x78] sm:$0xff]
      %v1783 = vld [vmem:[%s7 + $0x80] sm:$0xff]
      %v1784 = vld [vmem:[%s7 + $0x88] sm:$0xff]
      %v1785 = vld [vmem:[%s7 + $0x90] sm:$0xff]
      %v1786 = vld [vmem:[%s7 + $0x98] sm:$0xff]
      %v1787 = vld [vmem:[%s7 + $0xa0] sm:$0xff]
      %v1788 = vld [vmem:[%s7 + $0xa8] sm:$0xff]
      %v1789 = vld [vmem:[%s7 + $0xb0] sm:$0xff]
      %v1790 = vld [vmem:[%s7 + $0xb8] sm:$0xff]
      %v1791 = vld [vmem:[%s7 + $0xc0] sm:$0xff]
      %v1792 = vld [vmem:[%s7 + $0xc8] sm:$0xff]
      %v1793 = vld [vmem:[%s7 + $0xd0] sm:$0xff]
      %v1794 = vld [vmem:[%s7 + $0xd8] sm:$0xff]
      %v1795 = vld [vmem:[%s7 + $0xe0] sm:$0xff]
      %v1796 = vld [vmem:[%s7 + $0xe8] sm:$0xff]
      %v1797 = vld [vmem:[%s7 + $0xf0] sm:$0xff]
      %v1798 = vld [vmem:[%s7 + $0xf8] sm:$0xff]
      %v1799 = vld [vmem:[%s7 + $0x100] sm:$0xff]
      %v1800 = vld [vmem:[%s7 + $0x108] sm:$0xff]
      %v1801 = vld [vmem:[%s7 + $0x110] sm:$0xff]
      %v1802 = vld [vmem:[%s7 + $0x118] sm:$0xff]
      %v1803 = vld [vmem:[%s7 + $0x120] sm:$0xff]
      %v1804 = vld [vmem:[%s7 + $0x128] sm:$0xff]
      %v1805 = vld [vmem:[%s7 + $0x130] sm:$0xff]
      %v1806 = vld [vmem:[%s7 + $0x138] sm:$0xff]
      %v1807 = vld [vmem:[%s7 + $0x140] sm:$0xff]
      %v1808 = vld [vmem:[%s7 + $0x148] sm:$0xff]
      %v1809 = vld [vmem:[%s7 + $0x150] sm:$0xff]
      %v1810 = vld [vmem:[%s7 + $0x158] sm:$0xff]
      %v1811 = vld [vmem:[%s7 + $0x160] sm:$0xff]
      %v1812 = vld [vmem:[%s7 + $0x168] sm:$0xff]
      %v1813 = vld [vmem:[%s7 + $0x170] sm:$0xff]
      %v1814 = vld [vmem:[%s7 + $0x178] sm:$0xff]
      %v1815 = vld [vmem:[%s7 + $0x180] sm:$0xff]
      %v1816 = vld [vmem:[%s7 + $0x188] sm:$0xff]
      %v1817 = vld [vmem:[%s7 + $0x190] sm:$0xff]
      %v1818 = vld [vmem:[%s7 + $0x198] sm:$0xff]
      %v1819 = vld [vmem:[%s7 + $0x1a0] sm:$0xff]
      %v1820 = vld [vmem:[%s7 + $0x1a8] sm:$0xff]
      %v1821 = vld [vmem:[%s7 + $0x1b0] sm:$0xff]
      %v1822 = vld [vmem:[%s7 + $0x1b8] sm:$0xff]
      %v1823 = vld [vmem:[%s7 + $0x1c0] sm:$0xff]
      %v1824 = vld [vmem:[%s7 + $0x1c8] sm:$0xff]
      %v1825 = vld [vmem:[%s7 + $0x1d0] sm:$0xff]
      %v1826 = vld [vmem:[%s7 + $0x1d8] sm:$0xff]
      %v1827 = vld [vmem:[%s7 + $0x1e0] sm:$0xff]
      %v1828 = vld [vmem:[%s7 + $0x1e8] sm:$0xff]
      %v1829 = vld [vmem:[%s7 + $0x1f0] sm:$0xff]
      %v1830 = vld [vmem:[%s7 + $0x1f8] sm:$0xff]
      %v1831 = vld [vmem:[%s7 + $0x200] sm:$0xff]
      %v1832 = vld [vmem:[%s7 + $0x208] sm:$0xff]
      %v1833 = vld [vmem:[%s7 + $0x210] sm:$0xff]
      %v1834 = vld [vmem:[%s7 + $0x218] sm:$0xff]
      %v1835 = vld [vmem:[%s7 + $0x220] sm:$0xff]
      %v1836 = vld [vmem:[%s7 + $0x228] sm:$0xff]
      %v1837 = vld [vmem:[%s7 + $0x230] sm:$0xff]
      %v1838 = vld [vmem:[%s7 + $0x238] sm:$0xff]
      %v1839 = vld [vmem:[%s7 + $0x240] sm:$0xff]
      %v1840 = vld [vmem:[%s7 + $0x248] sm:$0xff]
      %v1841 = vld [vmem:[%s7 + $0x250] sm:$0xff]
      %v1842 = vld [vmem:[%s7 + $0x258] sm:$0xff]
      %v1843 = vld [vmem:[%s7 + $0x260] sm:$0xff]
      %v1844 = vld [vmem:[%s7 + $0x268] sm:$0xff]
      %v1845 = vld [vmem:[%s7 + $0x270] sm:$0xff]
      %v1846 = vld [vmem:[%s7 + $0x278] sm:$0xff]
      %v1847 = vld [vmem:[%s8] sm:$0x3]
      %v1849 = vlaneseq
      %v1850 = vshrl.u32 %v1849, 7
      %v1851 = vsub.s32 0, %v1850
      %v1852 = vrot.slane %v1847, %v1851
      %v1853 = vlaneseq
      %v1854 = vshrl.u32 %v1853, 7
      %v1855 = vsub.s32 1, %v1854
      %v1856 = vrot.slane %v1847, %v1855
      %v1860 = vsel %vm886, %v1753, 0
      %1862 = vmatprep.subr.mxu0 %v1768
      %1863 = vmatpush1.msra.mxu0 %v1767
      %1864 = vmatprep.subr.mxu0 %v1770
      %1865 = vmatpush1.msra.mxu0 %v1769
      %1866 = vmatprep.subr.mxu0 %v1772
      %1867 = vmatpush1.msra.mxu0 %v1771
      %1868 = vmatprep.subr.mxu0 %v1774
      %1869 = vmatpush1.msra.mxu0 %v1773
      %1870 = vmatprep.subr.mxu0 %v1776
      %1871 = vmatpush1.msra.mxu0 %v1775
      %1872 = vmatprep.subr.mxu0 %v1778
      %1873 = vmatpush1.msra.mxu0 %v1777
      %1874 = vmatprep.subr.mxu0 %v1780
      %1875 = vmatpush1.msra.mxu0 %v1779
      %1876 = vmatprep.subr.mxu0 %v1782
      %1877 = vmatpush1.msra.mxu0 %v1781
      %1878 = vmatprep.subr.mxu0 %v1784
      %1879 = vmatpush1.msra.mxu0 %v1783
      %1880 = vmatprep.subr.mxu0 %v1786
      %1881 = vmatpush1.msra.mxu0 %v1785
      %1882 = vmatprep.subr.mxu0 %v1788
      %1883 = vmatpush1.msra.mxu0 %v1787
      %1884 = vmatprep.subr.mxu0 %v1790
      %1885 = vmatpush1.msra.mxu0 %v1789
      %1886 = vmatprep.subr.mxu0 %v1792
      %1887 = vmatpush1.msra.mxu0 %v1791
      %1888 = vmatprep.subr.mxu0 %v1794
      %1889 = vmatpush1.msra.mxu0 %v1793
      %1890 = vmatprep.subr.mxu0 %v1796
      %1891 = vmatpush1.msra.mxu0 %v1795
      %1892 = vmatprep.subr.mxu0 %v1798
      %1893 = vmatpush1.msra.mxu0 %v1797
      %1894 = vmatprep.subr.mxu0 %v1800
      %1895 = vmatpush1.msra.mxu0 %v1799
      %1896 = vmatprep.subr.mxu0 %v1802
      %1897 = vmatpush1.msra.mxu0 %v1801
      %1898 = vmatprep.subr.mxu0 %v1804
      %1899 = vmatpush1.msra.mxu0 %v1803
      %1900 = vmatprep.subr.mxu0 %v1806
      %1901 = vmatpush1.msra.mxu0 %v1805
      %1902 = vmatprep.subr.mxu0 %v1808
      %1903 = vmatpush1.msra.mxu0 %v1807
      %1904 = vmatprep.subr.mxu0 %v1810
      %1905 = vmatpush1.msra.mxu0 %v1809
      %1906 = vmatprep.subr.mxu0 %v1812
      %1907 = vmatpush1.msra.mxu0 %v1811
      %1908 = vmatprep.subr.mxu0 %v1814
      %1909 = vmatpush1.msra.mxu0 %v1813
      %1910 = vmatprep.subr.mxu0 %v1816
      %1911 = vmatpush1.msra.mxu0 %v1815
      %1912 = vmatprep.subr.mxu0 %v1818
      %1913 = vmatpush1.msra.mxu0 %v1817
      %1914 = vmatprep.subr.mxu0 %v1820
      %1915 = vmatpush1.msra.mxu0 %v1819
      %1916 = vmatprep.subr.mxu0 %v1822
      %1917 = vmatpush1.msra.mxu0 %v1821
      %1918 = vmatprep.subr.mxu0 %v1824
      %1919 = vmatpush1.msra.mxu0 %v1823
      %1920 = vmatprep.subr.mxu0 %v1826
      %1921 = vmatpush1.msra.mxu0 %v1825
      %1922 = vmatprep.subr.mxu0 %v1828
      %1923 = vmatpush1.msra.mxu0 %v1827
      %1924 = vmatprep.subr.mxu0 %v1830
      %1925 = vmatpush1.msra.mxu0 %v1829
      %1926 = vmatprep.mubr.f32.mxu0 %v1766
      %1927 = vmatmul.mubr.f32.gmra.mrb[0].mxu0 %v1765
      %v1928 = vpop.f32.mrb[0].mxu0
      %v1929 = vadd.f32 %v1852, %v1928
      %v1930 = vpop.f32.mrb[0].mxu0
      %v1931 = vadd.f32 %v1856, %v1930
      %1932 = vdwg.mxu0
      %1933 = vmatprep.subr.mxu0 %v1832
      %1934 = vmatpush1.msra.mxu0 %v1831
      %1935 = vmatprep.subr.mxu0 %v1834
      %1936 = vmatpush1.msra.mxu0 %v1833
      %1937 = vmatprep.subr.mxu0 %v1836
      %1938 = vmatpush1.msra.mxu0 %v1835
      %1939 = vmatprep.subr.mxu0 %v1838
      %1940 = vmatpush1.msra.mxu0 %v1837
      %1941 = vmatprep.subr.mxu0 %v1840
      %1942 = vmatpush1.msra.mxu0 %v1839
      %1943 = vmatprep.subr.mxu0 %v1842
      %1944 = vmatpush1.msra.mxu0 %v1841
      %1945 = vmatprep.subr.mxu0 %v1844
      %1946 = vmatpush1.msra.mxu0 %v1843
      %1947 = vmatprep.subr.mxu0 %v1846
      %1948 = vmatpush1.msra.mxu0 %v1845
      %1949 = vmatprep.subr.mxu0 0.0
      %1950 = vmatpush1.msra.mxu0 0.0
      %1951 = vmatprep.subr.mxu0 0.0
      %1952 = vmatpush1.msra.mxu0 0.0
      %1953 = vmatprep.subr.mxu0 0.0
      %1954 = vmatpush1.msra.mxu0 0.0
      %1955 = vmatprep.subr.mxu0 0.0
      %1956 = vmatpush1.msra.mxu0 0.0
      %1957 = vmatprep.subr.mxu0 0.0
      %1958 = vmatpush1.msra.mxu0 0.0
      %1959 = vmatprep.subr.mxu0 0.0
      %1960 = vmatpush1.msra.mxu0 0.0
      %1961 = vmatprep.subr.mxu0 0.0
      %1962 = vmatpush1.msra.mxu0 0.0
      %1963 = vmatprep.subr.mxu0 0.0
      %1964 = vmatpush1.msra.mxu0 0.0
      %1965 = vmatprep.subr.mxu0 0.0
      %1966 = vmatpush1.msra.mxu0 0.0
      %1967 = vmatprep.subr.mxu0 0.0
      %1968 = vmatpush1.msra.mxu0 0.0
      %1969 = vmatprep.subr.mxu0 0.0
      %1970 = vmatpush1.msra.mxu0 0.0
      %1971 = vmatprep.subr.mxu0 0.0
      %1972 = vmatpush1.msra.mxu0 0.0
      %1973 = vmatprep.subr.mxu0 0.0
      %1974 = vmatpush1.msra.mxu0 0.0
      %1975 = vmatprep.subr.mxu0 0.0
      %1976 = vmatpush1.msra.mxu0 0.0
      %1977 = vmatprep.subr.mxu0 0.0
      %1978 = vmatpush1.msra.mxu0 0.0
      %1979 = vmatprep.subr.mxu0 0.0
      %1980 = vmatpush1.msra.mxu0 0.0
      %1981 = vmatprep.subr.mxu0 0.0
      %1982 = vmatpush1.msra.mxu0 0.0
      %1983 = vmatprep.subr.mxu0 0.0
      %1984 = vmatpush1.msra.mxu0 0.0
      %1985 = vmatprep.subr.mxu0 0.0
      %1986 = vmatpush1.msra.mxu0 0.0
      %1987 = vmatprep.subr.mxu0 0.0
      %1988 = vmatpush1.msra.mxu0 0.0
      %1989 = vmatprep.subr.mxu0 0.0
      %1990 = vmatpush1.msra.mxu0 0.0
      %1991 = vmatprep.subr.mxu0 0.0
      %1992 = vmatpush1.msra.mxu0 0.0
      %1993 = vmatprep.subr.mxu0 0.0
      %1994 = vmatpush1.msra.mxu0 0.0
      %1995 = vmatprep.subr.mxu0 0.0
      %1996 = vmatpush1.msra.mxu0 0.0
      %1997 = vmatprep.mubr.f32.mxu0 0.0
      %1998 = vmatmul.mubr.f32.gmra.mrb[0].mxu0 %v1860
      %v1999 = vpop.f32.mrb[0].mxu0
      %v2000 = vadd.f32 %v1929, %v1999
      %v2001 = vpop.f32.mrb[0].mxu0
      %v2002 = vadd.f32 %v1931, %v2001
      %2003 = vdwg.mxu0
      %v2004 = vmax.f32 %v2000, 0.0
      %v2005 = vmax.f32 %v2002, 0.0
      %v2006 = vld [vmem:[%s9] sm:$0xff]
      %v2007 = vld [vmem:[%s9 + $0x8] sm:$0xff]
      %v2008 = vld [vmem:[%s9 + $0x10] sm:$0xff]
      %v2009 = vld [vmem:[%s9 + $0x18] sm:$0xff]
      %v2010 = vld [vmem:[%s9 + $0x20] sm:$0xff]
      %v2011 = vld [vmem:[%s9 + $0x28] sm:$0xff]
      %v2012 = vld [vmem:[%s9 + $0x30] sm:$0xff]
      %v2013 = vld [vmem:[%s9 + $0x38] sm:$0xff]
      %v2014 = vld [vmem:[%s9 + $0x40] sm:$0xff]
      %v2015 = vld [vmem:[%s9 + $0x48] sm:$0xff]
      %v2016 = vld [vmem:[%s9 + $0x50] sm:$0xff]
      %v2017 = vld [vmem:[%s9 + $0x58] sm:$0xff]
      %v2018 = vld [vmem:[%s9 + $0x60] sm:$0xff]
      %v2019 = vld [vmem:[%s9 + $0x68] sm:$0xff]
      %v2020 = vld [vmem:[%s9 + $0x70] sm:$0xff]
      %v2021 = vld [vmem:[%s9 + $0x78] sm:$0xff]
      %v2022 = vld [vmem:[%s9 + $0x80] sm:$0xff]
      %v2023 = vld [vmem:[%s9 + $0x88] sm:$0xff]
      %v2024 = vld [vmem:[%s9 + $0x90] sm:$0xff]
      %v2025 = vld [vmem:[%s9 + $0x98] sm:$0xff]
      %v2026 = vld [vmem:[%s9 + $0xa0] sm:$0xff]
      %v2027 = vld [vmem:[%s9 + $0xa8] sm:$0xff]
      %v2028 = vld [vmem:[%s9 + $0xb0] sm:$0xff]
      %v2029 = vld [vmem:[%s9 + $0xb8] sm:$0xff]
      %v2030 = vld [vmem:[%s9 + $0xc0] sm:$0xff]
      %v2031 = vld [vmem:[%s9 + $0xc8] sm:$0xff]
      %v2032 = vld [vmem:[%s9 + $0xd0] sm:$0xff]
      %v2033 = vld [vmem:[%s9 + $0xd8] sm:$0xff]
      %v2034 = vld [vmem:[%s9 + $0xe0] sm:$0xff]
      %v2035 = vld [vmem:[%s9 + $0xe8] sm:$0xff]
      %v2036 = vld [vmem:[%s9 + $0xf0] sm:$0xff]
      %v2037 = vld [vmem:[%s9 + $0xf8] sm:$0xff]
      %v2038 = vld [vmem:[%s9 + $0x100] sm:$0xff]
      %v2039 = vld [vmem:[%s9 + $0x108] sm:$0xff]
      %v2040 = vld [vmem:[%s9 + $0x110] sm:$0xff]
      %v2041 = vld [vmem:[%s9 + $0x118] sm:$0xff]
      %v2042 = vld [vmem:[%s9 + $0x120] sm:$0xff]
      %v2043 = vld [vmem:[%s9 + $0x128] sm:$0xff]
      %v2044 = vld [vmem:[%s9 + $0x130] sm:$0xff]
      %v2045 = vld [vmem:[%s9 + $0x138] sm:$0xff]
      %v2046 = vld [vmem:[%s9 + $0x140] sm:$0xff]
      %v2047 = vld [vmem:[%s9 + $0x148] sm:$0xff]
      %v2048 = vld [vmem:[%s9 + $0x150] sm:$0xff]
      %v2049 = vld [vmem:[%s9 + $0x158] sm:$0xff]
      %v2050 = vld [vmem:[%s9 + $0x160] sm:$0xff]
      %v2051 = vld [vmem:[%s9 + $0x168] sm:$0xff]
      %v2052 = vld [vmem:[%s9 + $0x170] sm:$0xff]
      %v2053 = vld [vmem:[%s9 + $0x178] sm:$0xff]
      %v2054 = vld [vmem:[%s9 + $0x180] sm:$0xff]
      %v2055 = vld [vmem:[%s9 + $0x188] sm:$0xff]
      %v2056 = vld [vmem:[%s9 + $0x190] sm:$0xff]
      %v2057 = vld [vmem:[%s9 + $0x198] sm:$0xff]
      %v2058 = vld [vmem:[%s9 + $0x1a0] sm:$0xff]
      %v2059 = vld [vmem:[%s9 + $0x1a8] sm:$0xff]
      %v2060 = vld [vmem:[%s9 + $0x1b0] sm:$0xff]
      %v2061 = vld [vmem:[%s9 + $0x1b8] sm:$0xff]
      %v2062 = vld [vmem:[%s9 + $0x1c0] sm:$0xff]
      %v2063 = vld [vmem:[%s9 + $0x1c8] sm:$0xff]
      %v2064 = vld [vmem:[%s9 + $0x1d0] sm:$0xff]
      %v2065 = vld [vmem:[%s9 + $0x1d8] sm:$0xff]
      %v2066 = vld [vmem:[%s9 + $0x1e0] sm:$0xff]
      %v2067 = vld [vmem:[%s9 + $0x1e8] sm:$0xff]
      %v2068 = vld [vmem:[%s9 + $0x1f0] sm:$0xff]
      %v2069 = vld [vmem:[%s9 + $0x1f8] sm:$0xff]
      %v2070 = vld [vmem:[%s10] sm:$0x3]
      %v2072 = vlaneseq
      %v2073 = vshrl.u32 %v2072, 7
      %v2074 = vsub.s32 0, %v2073
      %v2075 = vrot.slane %v2070, %v2074
      %v2076 = vlaneseq
      %v2077 = vshrl.u32 %v2076, 7
      %v2078 = vsub.s32 1, %v2077
      %v2079 = vrot.slane %v2070, %v2078
      %2082 = vmatprep.subr.mxu0 %v2007
      %2083 = vmatpush1.msra.mxu0 %v2006
      %2084 = vmatprep.subr.mxu0 %v2009
      %2085 = vmatpush1.msra.mxu0 %v2008
      %2086 = vmatprep.subr.mxu0 %v2011
      %2087 = vmatpush1.msra.mxu0 %v2010
      %2088 = vmatprep.subr.mxu0 %v2013
      %2089 = vmatpush1.msra.mxu0 %v2012
      %2090 = vmatprep.subr.mxu0 %v2015
      %2091 = vmatpush1.msra.mxu0 %v2014
      %2092 = vmatprep.subr.mxu0 %v2017
      %2093 = vmatpush1.msra.mxu0 %v2016
      %2094 = vmatprep.subr.mxu0 %v2019
      %2095 = vmatpush1.msra.mxu0 %v2018
      %2096 = vmatprep.subr.mxu0 %v2021
      %2097 = vmatpush1.msra.mxu0 %v2020
      %2098 = vmatprep.subr.mxu0 %v2023
      %2099 = vmatpush1.msra.mxu0 %v2022
      %2100 = vmatprep.subr.mxu0 %v2025
      %2101 = vmatpush1.msra.mxu0 %v2024
      %2102 = vmatprep.subr.mxu0 %v2027
      %2103 = vmatpush1.msra.mxu0 %v2026
      %2104 = vmatprep.subr.mxu0 %v2029
      %2105 = vmatpush1.msra.mxu0 %v2028
      %2106 = vmatprep.subr.mxu0 %v2031
      %2107 = vmatpush1.msra.mxu0 %v2030
      %2108 = vmatprep.subr.mxu0 %v2033
      %2109 = vmatpush1.msra.mxu0 %v2032
      %2110 = vmatprep.subr.mxu0 %v2035
      %2111 = vmatpush1.msra.mxu0 %v2034
      %2112 = vmatprep.subr.mxu0 %v2037
      %2113 = vmatpush1.msra.mxu0 %v2036
      %2114 = vmatprep.subr.mxu0 %v2039
      %2115 = vmatpush1.msra.mxu0 %v2038
      %2116 = vmatprep.subr.mxu0 %v2041
      %2117 = vmatpush1.msra.mxu0 %v2040
      %2118 = vmatprep.subr.mxu0 %v2043
      %2119 = vmatpush1.msra.mxu0 %v2042
      %2120 = vmatprep.subr.mxu0 %v2045
      %2121 = vmatpush1.msra.mxu0 %v2044
      %2122 = vmatprep.subr.mxu0 %v2047
      %2123 = vmatpush1.msra.mxu0 %v2046
      %2124 = vmatprep.subr.mxu0 %v2049
      %2125 = vmatpush1.msra.mxu0 %v2048
      %2126 = vmatprep.subr.mxu0 %v2051
      %2127 = vmatpush1.msra.mxu0 %v2050
      %2128 = vmatprep.subr.mxu0 %v2053
      %2129 = vmatpush1.msra.mxu0 %v2052
      %2130 = vmatprep.subr.mxu0 %v2055
      %2131 = vmatpush1.msra.mxu0 %v2054
      %2132 = vmatprep.subr.mxu0 %v2057
      %2133 = vmatpush1.msra.mxu0 %v2056
      %2134 = vmatprep.subr.mxu0 %v2059
      %2135 = vmatpush1.msra.mxu0 %v2058
      %2136 = vmatprep.subr.mxu0 %v2061
      %2137 = vmatpush1.msra.mxu0 %v2060
      %2138 = vmatprep.subr.mxu0 %v2063
      %2139 = vmatpush1.msra.mxu0 %v2062
      %2140 = vmatprep.subr.mxu0 %v2065
      %2141 = vmatpush1.msra.mxu0 %v2064
      %2142 = vmatprep.subr.mxu0 %v2067
      %2143 = vmatpush1.msra.mxu0 %v2066
      %2144 = vmatprep.subr.mxu0 %v2069
      %2145 = vmatpush1.msra.mxu0 %v2068
      %2146 = vmatprep.mubr.f32.mxu0 %v2005
      %2147 = vmatmul.mubr.f32.gmra.mrb[0].mxu0 %v2004
      %v2148 = vpop.f32.mrb[0].mxu0
      %v2149 = vadd.f32 %v2075, %v2148
      %v2150 = vpop.f32.mrb[0].mxu0
      %v2151 = vadd.f32 %v2079, %v2150
      %2152 = vdwg.mxu0
      %v2154 = vrot.slane %v2149, 7
      %2155 = vrot.lane.b32.xlu0 %v2154, 106
      %v2156 = vpop.permute.xlu0 %2155
      %v2158 = vrot.slane %v2149, 6
      %2159 = vrot.lane.b32.xlu0 %v2158, 84
      %v2160 = vpop.permute.xlu0 %2159
      %v2162 = vrot.slane %v2149, 5
      %2163 = vrot.lane.b32.xlu0 %v2162, 62
      %v2164 = vpop.permute.xlu0 %2163
      %v2166 = vrot.slane %v2149, 4
      %2167 = vrot.lane.b32.xlu0 %v2166, 40
      %v2168 = vpop.permute.xlu0 %2167
      %v2171 = vrot.slane %v2149, 3
      %v2172 = vrot.slane %v2151, 3
      %2173 = vrot.lane.b32.xlu0 %v2171, 18
      %v2174 = vpop.permute.xlu0 %2173
      %2175 = vrot.lane.b32.xlu0 %v2172, 18
      %v2176 = vpop.permute.xlu0 %2175
      %vm2177 = vcmask 146432
      %v2178 = vsel %vm2177, %v2174, %v2176
      %vm2180 = vcmask 1040384
      %v2181 = vsel %vm2180, %v2149, %v2156
      %vm2182 = vcmask 1041408
      %v2183 = vsel %vm2182, %v2181, %v2160
      %vm2184 = vcmask 1042432
      %v2185 = vsel %vm2184, %v2183, %v2164
      %vm2186 = vcmask 1043456
      %v2187 = vsel %vm2186, %v2185, %v2168
      %vm2188 = vcmask 1044480
      %v2189 = vsel %vm2188, %v2187, %v2178
      %vm2190 = vcmask 177152
      %v2191 = vsel %vm2190, %v2189, -inf
      %2192 = vmax.xlane.f32.xlu0 %v2191
      %v2193 = vpop.xlane.xlu0 %2192
      %v2194 = vsub.f32 %v2189, %v2193
      %v2195 = vmul.f32 %v2194, 1.442695
      %v2196 = vpow.pop %v2195
      %v2197 = vsel %vm2190, %v2196, 0.0
      %2198 = vadd.xlane.f32.xlu0 %v2197
      %v2199 = vpop.xlane.xlu0 %2198
      %v2200 = vrcp.pop %v2199
      %v2201 = vmul.f32 %v2199, %v2200
      %v2202 = vsub.f32 2.0, %v2201
      %v2203 = vmul.f32 %v2200, %v2202
      %v2204 = vmul.f32 %v2196, %v2203
      %2205 = vst.msk [vmem:[%s384] sm:$0x3f] %vm2190, %v2204
      %p2206 = scmp.lt.s32.totalorder %s22, 1
      %s2207 = scalar_select %p2206, %s22, 1
      %s2208 = smul.addr %s2207, 8
      %s2209 = scalar_lea.vmem %s11, %s2208
      // Predicated region
      $region65: #{tabcnn_forward.1} parent=63 // pred_check
        %p2210 = pneg %p276
      $region66: #{tabcnn_forward.1} parent=63 // pred_check_branch
        %2212 = sbr.rel (%p2210) target = $region68
      $region67: #{tabcnn_forward.1} parent=63 // pred_region
        _
      $region68: #{tabcnn_forward.1} parent=63 // pred_fallthru
        _
    $region64: #{tabcnn_forward.1} parent=5 // pred_fallthru
      _
    %p2213 = scmp.le.s32.totalorder 2, %s17
    // Predicated region
    $region69: #{tabcnn_forward.1} parent=5 // pred_check
      %p2214 = pneg %p2213
    $region70: #{tabcnn_forward.1} parent=5 // pred_check_branch
      %2216 = sbr.rel (%p2214) target = $region72
    $region71: #{tabcnn_forward.1} parent=5 // pred_region
      %s2217 = ssub.s32 %s17, 2
      // Predicated region
      $region73: #{tabcnn_forward.1} parent=71 // pred_check
        %p2218 = pneg %p282
      $region74: #{tabcnn_forward.1} parent=71 // pred_check_branch
        %2220 = sbr.rel (%p2218) target = $region76
      $region75: #{tabcnn_forward.1} parent=71 // pred_region
        %p2221 = scmp.lt.s32.totalorder %s23, 1
        %s2222 = scalar_select %p2221, %s23, 1
        %s2223 = smul.addr %s2222, 8
        %s2224 = scalar_lea.vmem %s11, %s2223
      $region76: #{tabcnn_forward.1} parent=71 // pred_fallthru
        _
    $region72: #{tabcnn_forward.1} parent=5 // pred_fallthru
      _
  $region6: #{tabcnn_forward.1} parent=0 // loop_footer
    %s21 = sadd.s32 1, %s17
  $region7: #{tabcnn_forward.1} parent=0 // loop_footer_branch
    %16 = sbr.rel target = $region3
  $region8: #{tabcnn_forward.1} parent=0 // loop_exit
    _

</llo_original>
